<compile_context>
chip_gen: v6e
topology: v6e:2x2x1
jax: 0.10.0
libtpu: 0.0.40
codegen_flags: <defaults>
</compile_context>

<pallas_src>
import jax
import jax.numpy as jnp
from jax.experimental import pallas as pl
from jax.experimental.pallas import tpu as pltpu

BN_EPS = 1e-5
LANE = 128


def bottleneck_kernel(x_ref, w1_ref, b1_ref, w2_ref, b2_ref, w3_ref, b3_ref,
                      out_ref):
    # x_ref : (H, W, Cp)       one image, NHWC, bf16, channels zero-padded to LANE
    # w1_ref: (Cp, Cwp)        conv1 1x1 weight, bn1 scale folded, bf16
    # w2_ref: (3, 3*Cwp, Cwp)  conv2 3x3 weight; [kw] -> rows ordered (kh=0,1,2), bf16
    # w3_ref: (Cwp, Cp)        conv3 1x1 weight, bn3 scale folded, bf16
    # b*_ref: (1, C)           folded BatchNorm biases, f32
    # out_ref:(H, W, Cp)       output image, f32
    H, W, Cp = out_ref.shape
    Cwp = w1_ref.shape[-1]

    x = x_ref[...]                                                # (H, W, Cp) bf16

    # ---- conv1 (1x1) + bn1 + relu : one channel matmul over all H*W rows ----
    y1 = jnp.dot(x.reshape(H * W, Cp), w1_ref[...],
                 preferred_element_type=jnp.float32)
    y1 = jnp.maximum(y1 + b1_ref[...], 0.0).reshape(H, W, Cwp)    # f32

    # ---- kw = 0 / 2 column shifts along W: XLU roll + boundary mask (zero pad) ----
    w_idx = jax.lax.broadcasted_iota(jnp.int32, (1, W, 1), 1)
    left = jnp.where(w_idx >= 1, pltpu.roll(y1, 1, axis=1), 0.0)          # y1[:, w-1]
    right = jnp.where(w_idx <= W - 2, pltpu.roll(y1, W - 1, axis=1), 0.0)  # y1[:, w+1]

    # Zero-row padding along H (cheap outermost-axis concat); bf16 for the MXU.
    zrow = jnp.zeros((1, W, Cwp), jnp.bfloat16)
    taps = [jnp.concatenate([zrow, t.astype(jnp.bfloat16), zrow], axis=0)
            for t in (left, y1, right)]                           # each (H+2, W, Cwp)

    # ---- conv2 (3x3) + bn2 + relu : 3 accumulating matmuls, K = 3*Cwp ----
    acc = jnp.zeros((H * W, Cwp), jnp.float32)
    for kw in range(3):
        patch = jnp.concatenate([taps[kw][kh:kh + H] for kh in range(3)],
                                axis=-1)                 # (H, W, 3*Cwp), lane-aligned
        acc = acc + jnp.dot(patch.reshape(H * W, 3 * Cwp), w2_ref[kw],
                            preferred_element_type=jnp.float32)
    y2 = jnp.maximum(acc + b2_ref[...], 0.0)                      # (H*W, Cwp) f32

    # ---- conv3 (1x1) + bn3 ----
    y3 = jnp.dot(y2.astype(jnp.bfloat16), w3_ref[...],
                 preferred_element_type=jnp.float32) + b3_ref[...]

    # ---- residual add (identity re-used from the resident input block) + relu ----
    y3 = y3 + x.reshape(H * W, Cp).astype(jnp.float32)
    out_ref[...] = jnp.maximum(y3, 0.0).reshape(H, W, Cp).astype(out_ref.dtype)


def _fold_bn(gamma, beta, mean, var, eps=BN_EPS):
    scale = (gamma / jnp.sqrt(var + eps)).astype(jnp.float32)
    bias = (beta - mean * scale).astype(jnp.float32)
    return scale, bias


def _round_up(x, m):
    return (x + m - 1) // m * m


def bottleneck_forward(x_nchw, w1, w2, w3, bn1, bn2, bn3):
    """x_nchw: (N, Cin, H, W) f32. w1:(Cw,Cin,1,1) w2:(Cw,Cw,3,3) w3:(Cout,Cw,1,1).
    bn*: (gamma, beta, running_mean, running_var). Returns NCHW f32, matching the
    PyTorch Bottleneck (eval-mode BN, stride=1, no downsample)."""
    N, Cin, H, W = x_nchw.shape
    Cw = w1.shape[0]
    Cout = w3.shape[0]
    assert Cin == Cout, "identity residual requires inplanes == planes*expansion"
    assert W % 8 == 0, "W must be sublane aligned"  # TODO(synk): ragged W (7, 14)

    Cp = _round_up(Cin, LANE)    # padded in/out channels (lane-dense residual path)
    Cwp = _round_up(Cw, LANE)    # padded bottleneck width

    s1, b1 = _fold_bn(*bn1)
    s2, b2 = _fold_bn(*bn2)
    s3, b3 = _fold_bn(*bn3)

    # NCHW -> NHWC, bf16, channels zero-padded to the lane width.  Padded channels
    # stay exactly zero through every stage (their weights / biases are zero).
    x = jnp.transpose(x_nchw, (0, 2, 3, 1)).astype(jnp.bfloat16)
    x = jnp.pad(x, ((0, 0), (0, 0), (0, 0), (0, Cp - Cin)))

    # Fold BN scales into the conv weights (per output channel), pad, cast bf16.
    w1f = jnp.pad((w1[:, :, 0, 0] * s1[:, None]).T,
                  ((0, Cp - Cin), (0, Cwp - Cw))).astype(jnp.bfloat16)       # (Cp, Cwp)
    w3f = jnp.pad((w3[:, :, 0, 0] * s3[:, None]).T,
                  ((0, Cwp - Cw), (0, Cp - Cout))).astype(jnp.bfloat16)      # (Cwp, Cp)
    w2s = w2 * s2[:, None, None, None]                                       # (Cw,Cw,3,3)
    w2f = jnp.stack([
        jnp.concatenate([
            jnp.pad(w2s[:, :, kh, kw].T, ((0, Cwp - Cw), (0, Cwp - Cw)))
            for kh in range(3)], axis=0)                                     # (3*Cwp, Cwp)
        for kw in range(3)], axis=0).astype(jnp.bfloat16)                    # (3, 3*Cwp, Cwp)

    b1p = jnp.pad(b1, (0, Cwp - Cw)).reshape(1, Cwp)
    b2p = jnp.pad(b2, (0, Cwp - Cw)).reshape(1, Cwp)
    b3p = jnp.pad(b3, (0, Cp - Cout)).reshape(1, Cp)

    out = pl.pallas_call(
        bottleneck_kernel,
        out_shape=jax.ShapeDtypeStruct((N, H, W, Cp), jnp.float32),
        grid_spec=pltpu.PrefetchScalarGridSpec(
            num_scalar_prefetch=0,
            grid=(N,),                         # whole image per step, pipelined over batch
            in_specs=[
                pl.BlockSpec((None, H, W, Cp), lambda n: (n, 0, 0, 0)),
                pl.BlockSpec(w1f.shape, lambda n: (0, 0)),
                pl.BlockSpec(b1p.shape, lambda n: (0, 0)),
                pl.BlockSpec(w2f.shape, lambda n: (0, 0, 0)),
                pl.BlockSpec(b2p.shape, lambda n: (0, 0)),
                pl.BlockSpec(w3f.shape, lambda n: (0, 0)),
                pl.BlockSpec(b3p.shape, lambda n: (0, 0)),
            ],
            out_specs=pl.BlockSpec((None, H, W, Cp), lambda n: (n, 0, 0, 0)),
        ),
        compiler_params=pltpu.CompilerParams(
            dimension_semantics=("parallel",),          # v7x: cores split on batch
            vmem_limit_bytes=32 * 1024 * 1024),
    )(x, w1f, b1p, w2f, b2p, w3f, b3p)

    # Drop channel padding, NHWC -> NCHW.
    return jnp.transpose(out[..., :Cout], (0, 3, 1, 2))


def reference_forward(x, w1, w2, w3, bn1, bn2, bn3):
    """Pure-JAX reference (lax.conv, f32) of the same Bottleneck forward."""
    def bn(y, p):
        g, b, m, v = p
        s = g / jnp.sqrt(v + BN_EPS)
        return y * s.reshape(1, -1, 1, 1) + (b - m * s).reshape(1, -1, 1, 1)

    def conv(y, w, pad):
        dn = jax.lax.conv_dimension_numbers(y.shape, w.shape, ('NCHW', 'OIHW', 'NCHW'))
        return jax.lax.conv_general_dilated(y, w, (1, 1), pad, dimension_numbers=dn)

    out = jnp.maximum(bn(conv(x, w1, ((0, 0), (0, 0))), bn1), 0.0)
    out = jnp.maximum(bn(conv(out, w2, ((1, 1), (1, 1))), bn2), 0.0)
    out = bn(conv(out, w3, ((0, 0), (0, 0))), bn3) + x
    return jnp.maximum(out, 0.0)


if __name__ == "__main__":
    # inplanes=16, planes=4 (base_width=64, groups=1) -> width=4, Cout=planes*4=16
    N, inplanes, H, W = 2, 16, 16, 16
    planes = 4
    width = planes
    Cout = planes * 4

    key = jax.random.PRNGKey(0)
    ks = jax.random.split(key, 7)
    x = jax.random.normal(ks[0], (N, inplanes, H, W), jnp.float32)
    w1 = jax.random.normal(ks[1], (width, inplanes, 1, 1), jnp.float32) * 0.2
    w2 = jax.random.normal(ks[2], (width, width, 3, 3), jnp.float32) * 0.2
    w3 = jax.random.normal(ks[3], (Cout, width, 1, 1), jnp.float32) * 0.2

    def mk_bn(k, c):
        k1, k2, k3, k4 = jax.random.split(k, 4)
        return (jax.random.normal(k1, (c,)) * 0.1 + 1.0,
                jax.random.normal(k2, (c,)) * 0.1,
                jax.random.normal(k3, (c,)) * 0.1,
                jax.nn.softplus(jax.random.normal(k4, (c,))) + 0.5)

    bn1 = mk_bn(ks[4], width)
    bn2 = mk_bn(ks[5], width)
    bn3 = mk_bn(ks[6], Cout)

    out = bottleneck_forward(x, w1, w2, w3, bn1, bn2, bn3)
    out = jax.block_until_ready(out)

    ref = reference_forward(x, w1, w2, w3, bn1, bn2, bn3)
    assert out.shape == (N, inplanes, H, W)
    err = float(jnp.max(jnp.abs(out - ref)))
    # bf16 MXU operands -> relaxed tolerance vs. the f32 reference.
    assert jnp.allclose(out, ref, atol=1e-1, rtol=1e-1), \
        f"mismatch vs JAX reference, max abs err {err}"

    print("KERNEL_OK")
</pallas_src>

<mosaic_0001>
module attributes {stable_mosaic.version = 11 : i64} {
  func.func @bottleneck_kernel(%arg0: i32, %arg1: memref<1x16x16x128xbf16, #tpu.memory_space<vmem>>, %arg2: memref<128x128xbf16, #tpu.memory_space<vmem>>, %arg3: memref<1x128xf32, #tpu.memory_space<vmem>>, %arg4: memref<3x384x128xbf16, #tpu.memory_space<vmem>>, %arg5: memref<1x128xf32, #tpu.memory_space<vmem>>, %arg6: memref<128x128xbf16, #tpu.memory_space<vmem>>, %arg7: memref<1x128xf32, #tpu.memory_space<vmem>>, %arg8: memref<1x16x16x128xf32, #tpu.memory_space<vmem>>) attributes {dimension_semantics = [#tpu.dimension_semantics<parallel>], iteration_bounds = array<i64: 2>, scalar_prefetch = 0 : i64, scratch_operands = 0 : i64, tpu.core_type = #tpu.core_type<tc>, window_params = [{transform_indices = @transform_0, window_bounds = array<i64: 1, 16, 16, 128>}, {pipeline_mode = #tpu.pipeline_mode<synchronous>, transform_indices = @transform_1, window_bounds = array<i64: 128, 128>}, {pipeline_mode = #tpu.pipeline_mode<synchronous>, transform_indices = @transform_2, window_bounds = array<i64: 1, 128>}, {pipeline_mode = #tpu.pipeline_mode<synchronous>, transform_indices = @transform_3, window_bounds = array<i64: 3, 384, 128>}, {pipeline_mode = #tpu.pipeline_mode<synchronous>, transform_indices = @transform_4, window_bounds = array<i64: 1, 128>}, {pipeline_mode = #tpu.pipeline_mode<synchronous>, transform_indices = @transform_5, window_bounds = array<i64: 128, 128>}, {pipeline_mode = #tpu.pipeline_mode<synchronous>, transform_indices = @transform_6, window_bounds = array<i64: 1, 128>}, {transform_indices = @transform_7, window_bounds = array<i64: 1, 16, 16, 128>}]} {
    %c0 = arith.constant 0 : index
    %c0_0 = arith.constant 0 : index
    %c0_1 = arith.constant 0 : index
    %c0_2 = arith.constant 0 : index
    %0 = vector.load %arg1[%c0, %c0_0, %c0_1, %c0_2] : memref<1x16x16x128xbf16, #tpu.memory_space<vmem>>, vector<1x16x16x128xbf16>
    %1 = vector.shape_cast %0 : vector<1x16x16x128xbf16> to vector<16x16x128xbf16>
    %2 = vector.shape_cast %1 : vector<16x16x128xbf16> to vector<256x128xbf16>
    %c0_3 = arith.constant 0 : index
    %c0_4 = arith.constant 0 : index
    %3 = vector.load %arg2[%c0_3, %c0_4] : memref<128x128xbf16, #tpu.memory_space<vmem>>, vector<128x128xbf16>
    %cst = arith.constant dense<0.000000e+00> : vector<256x128xf32>
    %4 = tpu.matmul %2, %3, %cst {dimension_numbers = #tpu.dot_dimension_numbers<[1], [0], [0], [1], [0, 0, 1, 1], [], []>} : vector<256x128xbf16>, vector<128x128xbf16>, vector<256x128xf32> -> vector<256x128xf32>
    %c0_5 = arith.constant 0 : index
    %c0_6 = arith.constant 0 : index
    %5 = vector.load %arg3[%c0_5, %c0_6] : memref<1x128xf32, #tpu.memory_space<vmem>>, vector<1x128xf32>
    %6 = vector.broadcast %5 : vector<1x128xf32> to vector<256x128xf32>
    %7 = arith.addf %4, %6 : vector<256x128xf32>
    %cst_7 = arith.constant 0.000000e+00 : f32
    %8 = vector.broadcast %cst_7 : f32 to vector<256x128xf32>
    %9 = arith.maximumf %7, %8 : vector<256x128xf32>
    %10 = vector.shape_cast %9 : vector<256x128xf32> to vector<16x16x128xf32>
    %11 = tpu.iota {dimensions = array<i32: 1>} : vector<1x16x1xi32>
    %c1_i32 = arith.constant 1 : i32
    %12 = vector.broadcast %c1_i32 : i32 to vector<1x16x1xi32>
    %13 = arith.cmpi sge, %11, %12 : vector<1x16x1xi32>
    %c1_i32_8 = arith.constant 1 : i32
    %14 = tpu.dynamic_rotate %10 by %c1_i32_8 dim 1 : vector<16x16x128xf32>, i32 -> vector<16x16x128xf32>
    %cst_9 = arith.constant 0.000000e+00 : f32
    %15 = vector.shape_cast %13 : vector<1x16x1xi1> to vector<1x16x1xi1>
    %16 = vector.broadcast %15 : vector<1x16x1xi1> to vector<16x16x128xi1>
    %17 = vector.broadcast %cst_9 : f32 to vector<16x16x128xf32>
    %18 = arith.select %16, %14, %17 : vector<16x16x128xi1>, vector<16x16x128xf32>
    %c14_i32 = arith.constant 14 : i32
    %19 = vector.broadcast %c14_i32 : i32 to vector<1x16x1xi32>
    %20 = arith.cmpi sle, %11, %19 : vector<1x16x1xi32>
    %c15_i32 = arith.constant 15 : i32
    %21 = tpu.dynamic_rotate %10 by %c15_i32 dim 1 : vector<16x16x128xf32>, i32 -> vector<16x16x128xf32>
    %cst_10 = arith.constant 0.000000e+00 : f32
    %22 = vector.shape_cast %20 : vector<1x16x1xi1> to vector<1x16x1xi1>
    %23 = vector.broadcast %22 : vector<1x16x1xi1> to vector<16x16x128xi1>
    %24 = vector.broadcast %cst_10 : f32 to vector<16x16x128xf32>
    %25 = arith.select %23, %21, %24 : vector<16x16x128xi1>, vector<16x16x128xf32>
    %cst_11 = arith.constant 0.000000e+00 : bf16
    %26 = vector.broadcast %cst_11 : bf16 to vector<1x16x128xbf16>
    %27 = arith.truncf %18 : vector<16x16x128xf32> to vector<16x16x128xbf16>
    %28 = tpu.concatenate %26, %27, %26 in 0 : vector<1x16x128xbf16>, vector<16x16x128xbf16>, vector<1x16x128xbf16> -> vector<18x16x128xbf16>
    %29 = arith.truncf %10 : vector<16x16x128xf32> to vector<16x16x128xbf16>
    %30 = tpu.concatenate %26, %29, %26 in 0 : vector<1x16x128xbf16>, vector<16x16x128xbf16>, vector<1x16x128xbf16> -> vector<18x16x128xbf16>
    %31 = arith.truncf %25 : vector<16x16x128xf32> to vector<16x16x128xbf16>
    %32 = tpu.concatenate %26, %31, %26 in 0 : vector<1x16x128xbf16>, vector<16x16x128xbf16>, vector<1x16x128xbf16> -> vector<18x16x128xbf16>
    %cst_12 = arith.constant 0.000000e+00 : f32
    %33 = vector.broadcast %cst_12 : f32 to vector<256x128xf32>
    %34 = vector.extract_strided_slice %28 {offsets = [0, 0, 0], sizes = [16, 16, 128], strides = [1, 1, 1]} : vector<18x16x128xbf16> to vector<16x16x128xbf16>
    %35 = vector.extract_strided_slice %28 {offsets = [1, 0, 0], sizes = [16, 16, 128], strides = [1, 1, 1]} : vector<18x16x128xbf16> to vector<16x16x128xbf16>
    %36 = vector.extract_strided_slice %28 {offsets = [2, 0, 0], sizes = [16, 16, 128], strides = [1, 1, 1]} : vector<18x16x128xbf16> to vector<16x16x128xbf16>
    %37 = tpu.concatenate %34, %35, %36 in 2 : vector<16x16x128xbf16>, vector<16x16x128xbf16>, vector<16x16x128xbf16> -> vector<16x16x384xbf16>
    %38 = vector.shape_cast %37 : vector<16x16x384xbf16> to vector<256x384xbf16>
    %c0_13 = arith.constant 0 : index
    %c0_14 = arith.constant 0 : index
    %c0_15 = arith.constant 0 : index
    %39 = vector.load %arg4[%c0_13, %c0_14, %c0_15] : memref<3x384x128xbf16, #tpu.memory_space<vmem>>, vector<1x384x128xbf16>
    %40 = vector.shape_cast %39 : vector<1x384x128xbf16> to vector<384x128xbf16>
    %cst_16 = arith.constant dense<0.000000e+00> : vector<256x128xf32>
    %41 = tpu.matmul %38, %40, %cst_16 {dimension_numbers = #tpu.dot_dimension_numbers<[1], [0], [0], [1], [0, 0, 1, 1], [], []>} : vector<256x384xbf16>, vector<384x128xbf16>, vector<256x128xf32> -> vector<256x128xf32>
    %42 = arith.addf %33, %41 : vector<256x128xf32>
    %43 = vector.extract_strided_slice %30 {offsets = [0, 0, 0], sizes = [16, 16, 128], strides = [1, 1, 1]} : vector<18x16x128xbf16> to vector<16x16x128xbf16>
    %44 = vector.extract_strided_slice %30 {offsets = [1, 0, 0], sizes = [16, 16, 128], strides = [1, 1, 1]} : vector<18x16x128xbf16> to vector<16x16x128xbf16>
    %45 = vector.extract_strided_slice %30 {offsets = [2, 0, 0], sizes = [16, 16, 128], strides = [1, 1, 1]} : vector<18x16x128xbf16> to vector<16x16x128xbf16>
    %46 = tpu.concatenate %43, %44, %45 in 2 : vector<16x16x128xbf16>, vector<16x16x128xbf16>, vector<16x16x128xbf16> -> vector<16x16x384xbf16>
    %47 = vector.shape_cast %46 : vector<16x16x384xbf16> to vector<256x384xbf16>
    %c1 = arith.constant 1 : index
    %c0_17 = arith.constant 0 : index
    %c0_18 = arith.constant 0 : index
    %48 = vector.load %arg4[%c1, %c0_17, %c0_18] : memref<3x384x128xbf16, #tpu.memory_space<vmem>>, vector<1x384x128xbf16>
    %49 = vector.shape_cast %48 : vector<1x384x128xbf16> to vector<384x128xbf16>
    %cst_19 = arith.constant dense<0.000000e+00> : vector<256x128xf32>
    %50 = tpu.matmul %47, %49, %cst_19 {dimension_numbers = #tpu.dot_dimension_numbers<[1], [0], [0], [1], [0, 0, 1, 1], [], []>} : vector<256x384xbf16>, vector<384x128xbf16>, vector<256x128xf32> -> vector<256x128xf32>
    %51 = arith.addf %42, %50 : vector<256x128xf32>
    %52 = vector.extract_strided_slice %32 {offsets = [0, 0, 0], sizes = [16, 16, 128], strides = [1, 1, 1]} : vector<18x16x128xbf16> to vector<16x16x128xbf16>
    %53 = vector.extract_strided_slice %32 {offsets = [1, 0, 0], sizes = [16, 16, 128], strides = [1, 1, 1]} : vector<18x16x128xbf16> to vector<16x16x128xbf16>
    %54 = vector.extract_strided_slice %32 {offsets = [2, 0, 0], sizes = [16, 16, 128], strides = [1, 1, 1]} : vector<18x16x128xbf16> to vector<16x16x128xbf16>
    %55 = tpu.concatenate %52, %53, %54 in 2 : vector<16x16x128xbf16>, vector<16x16x128xbf16>, vector<16x16x128xbf16> -> vector<16x16x384xbf16>
    %56 = vector.shape_cast %55 : vector<16x16x384xbf16> to vector<256x384xbf16>
    %c2 = arith.constant 2 : index
    %c0_20 = arith.constant 0 : index
    %c0_21 = arith.constant 0 : index
    %57 = vector.load %arg4[%c2, %c0_20, %c0_21] : memref<3x384x128xbf16, #tpu.memory_space<vmem>>, vector<1x384x128xbf16>
    %58 = vector.shape_cast %57 : vector<1x384x128xbf16> to vector<384x128xbf16>
    %cst_22 = arith.constant dense<0.000000e+00> : vector<256x128xf32>
    %59 = tpu.matmul %56, %58, %cst_22 {dimension_numbers = #tpu.dot_dimension_numbers<[1], [0], [0], [1], [0, 0, 1, 1], [], []>} : vector<256x384xbf16>, vector<384x128xbf16>, vector<256x128xf32> -> vector<256x128xf32>
    %60 = arith.addf %51, %59 : vector<256x128xf32>
    %c0_23 = arith.constant 0 : index
    %c0_24 = arith.constant 0 : index
    %61 = vector.load %arg5[%c0_23, %c0_24] : memref<1x128xf32, #tpu.memory_space<vmem>>, vector<1x128xf32>
    %62 = vector.broadcast %61 : vector<1x128xf32> to vector<256x128xf32>
    %63 = arith.addf %60, %62 : vector<256x128xf32>
    %cst_25 = arith.constant 0.000000e+00 : f32
    %64 = vector.broadcast %cst_25 : f32 to vector<256x128xf32>
    %65 = arith.maximumf %63, %64 : vector<256x128xf32>
    %66 = arith.truncf %65 : vector<256x128xf32> to vector<256x128xbf16>
    %c0_26 = arith.constant 0 : index
    %c0_27 = arith.constant 0 : index
    %67 = vector.load %arg6[%c0_26, %c0_27] : memref<128x128xbf16, #tpu.memory_space<vmem>>, vector<128x128xbf16>
    %cst_28 = arith.constant dense<0.000000e+00> : vector<256x128xf32>
    %68 = tpu.matmul %66, %67, %cst_28 {dimension_numbers = #tpu.dot_dimension_numbers<[1], [0], [0], [1], [0, 0, 1, 1], [], []>} : vector<256x128xbf16>, vector<128x128xbf16>, vector<256x128xf32> -> vector<256x128xf32>
    %c0_29 = arith.constant 0 : index
    %c0_30 = arith.constant 0 : index
    %69 = vector.load %arg7[%c0_29, %c0_30] : memref<1x128xf32, #tpu.memory_space<vmem>>, vector<1x128xf32>
    %70 = vector.broadcast %69 : vector<1x128xf32> to vector<256x128xf32>
    %71 = arith.addf %68, %70 : vector<256x128xf32>
    %72 = vector.shape_cast %1 : vector<16x16x128xbf16> to vector<256x128xbf16>
    %73 = arith.extf %72 : vector<256x128xbf16> to vector<256x128xf32>
    %74 = arith.addf %71, %73 : vector<256x128xf32>
    %cst_31 = arith.constant 0.000000e+00 : f32
    %75 = vector.broadcast %cst_31 : f32 to vector<256x128xf32>
    %76 = arith.maximumf %74, %75 : vector<256x128xf32>
    %77 = vector.shape_cast %76 : vector<256x128xf32> to vector<16x16x128xf32>
    %c0_32 = arith.constant 0 : index
    %c0_33 = arith.constant 0 : index
    %c0_34 = arith.constant 0 : index
    %c0_35 = arith.constant 0 : index
    %78 = vector.load %arg8[%c0_32, %c0_33, %c0_34, %c0_35] : memref<1x16x16x128xf32, #tpu.memory_space<vmem>>, vector<1x16x16x128xf32>
    %79 = vector.shape_cast %78 : vector<1x16x16x128xf32> to vector<16x16x128xf32>
    %80 = vector.shape_cast %77 : vector<16x16x128xf32> to vector<1x16x16x128xf32>
    tpu.vector_store %arg8[%c0_32, %c0_33, %c0_34, %c0_35], %80 {strides = array<i32>} : memref<1x16x16x128xf32, #tpu.memory_space<vmem>>, vector<1x16x16x128xf32>,
    return
  }
  func.func @transform_0(%arg0: i32) -> (i32, i32, i32, i32) {
    %c0_i32 = arith.constant 0 : i32
    %c0_i32_0 = arith.constant 0 : i32
    %c0_i32_1 = arith.constant 0 : i32
    %c0_i32_2 = arith.constant 0 : i32
    return %arg0, %c0_i32, %c0_i32_0, %c0_i32_1 : i32, i32, i32, i32
  }
  func.func @transform_1(%arg0: i32) -> (i32, i32) {
    %c0_i32 = arith.constant 0 : i32
    %c0_i32_0 = arith.constant 0 : i32
    %c0_i32_1 = arith.constant 0 : i32
    return %c0_i32, %c0_i32_0 : i32, i32
  }
  func.func @transform_2(%arg0: i32) -> (i32, i32) {
    %c0_i32 = arith.constant 0 : i32
    %c0_i32_0 = arith.constant 0 : i32
    %c0_i32_1 = arith.constant 0 : i32
    return %c0_i32, %c0_i32_0 : i32, i32
  }
  func.func @transform_3(%arg0: i32) -> (i32, i32, i32) {
    %c0_i32 = arith.constant 0 : i32
    %c0_i32_0 = arith.constant 0 : i32
    %c0_i32_1 = arith.constant 0 : i32
    %c0_i32_2 = arith.constant 0 : i32
    return %c0_i32, %c0_i32_0, %c0_i32_1 : i32, i32, i32
  }
  func.func @transform_4(%arg0: i32) -> (i32, i32) {
    %c0_i32 = arith.constant 0 : i32
    %c0_i32_0 = arith.constant 0 : i32
    %c0_i32_1 = arith.constant 0 : i32
    return %c0_i32, %c0_i32_0 : i32, i32
  }
  func.func @transform_5(%arg0: i32) -> (i32, i32) {
    %c0_i32 = arith.constant 0 : i32
    %c0_i32_0 = arith.constant 0 : i32
    %c0_i32_1 = arith.constant 0 : i32
    return %c0_i32, %c0_i32_0 : i32, i32
  }
  func.func @transform_6(%arg0: i32) -> (i32, i32) {
    %c0_i32 = arith.constant 0 : i32
    %c0_i32_0 = arith.constant 0 : i32
    %c0_i32_1 = arith.constant 0 : i32
    return %c0_i32, %c0_i32_0 : i32, i32
  }
  func.func @transform_7(%arg0: i32) -> (i32, i32, i32, i32) {
    %c0_i32 = arith.constant 0 : i32
    %c0_i32_0 = arith.constant 0 : i32
    %c0_i32_1 = arith.constant 0 : i32
    %c0_i32_2 = arith.constant 0 : i32
    return %arg0, %c0_i32, %c0_i32_0, %c0_i32_1 : i32, i32, i32, i32
  }
}

</mosaic_0001>

<llo_original>
// kernel: tpu_custom_call.1
$region0: #{tpu_custom_call.1}
  #allocation0 [shape = 'u32[]', space=smem, size = 0x4, offset = 0x4, fixed_abs, tag = 'smem constant byte address 0x4 - core index']
  #allocation1 [shape = 'u32[144,128]{1,0:T(1,128)}', space=vmem, size = 0x12000, scoped, tag = 'internal scratch']
  %s0 = inlined_call_operand.hbm [shape: bf16[2,16,16,128], index: 0, kind: input, shape index: {}]
  %s1 = inlined_call_operand.hbm [shape: bf16[128,128], index: 1, kind: input, shape index: {}]
  %s2 = inlined_call_operand.vmem [shape: f32[1,128], index: 2, kind: input, shape index: {}]
  %s3 = inlined_call_operand.hbm [shape: bf16[3,384,128], index: 3, kind: input, shape index: {}]
  %s4 = inlined_call_operand.vmem [shape: f32[1,128], index: 4, kind: input, shape index: {}]
  %s5 = inlined_call_operand.hbm [shape: bf16[128,128], index: 5, kind: input, shape index: {}]
  %s6 = inlined_call_operand.vmem [shape: f32[1,128], index: 6, kind: input, shape index: {}]
  %s7 = inlined_call_operand.hbm [shape: f32[2,16,16,128], index: 7, kind: output, shape index: {}]
  %s8 = sld [smem:[#allocation0]]
  $region77: #{tpu_custom_call.1} parent=0
    _
  %s10 = ssub.s32 1, %s8
  %s11 = scalar_select 0, %s10, %s8
  $region1: #{tpu_custom_call.1} parent=0
    #allocation2 [shape = 'u8[131072]{0}', space=vmem, size = 0x20000, scoped, tag = 'input window, operand 0']
    #allocation3 [shape = 's32[2]{0}', space=sflag, size = 0x8, scoped, tag = 'scoped memory for tpu_custom_call.1']
    #allocation4 [shape = 's32[2]{0}', space=sflag, size = 0x8, scoped, tag = 'scoped memory for tpu_custom_call.1']
    #allocation5 [shape = 'u8[32768]{0}', space=vmem, size = 0x8000, scoped, tag = 'input window, operand 1, single buffered']
    #allocation6 [shape = 's32[1]{0}', space=sflag, size = 0x4, scoped, tag = 'scoped memory for tpu_custom_call.1']
    #allocation7 [shape = 'u8[294912]{0}', space=vmem, size = 0x48000, scoped, tag = 'input window, operand 3, single buffered']
    #allocation8 [shape = 'u8[32768]{0}', space=vmem, size = 0x8000, scoped, tag = 'input window, operand 5, single buffered']
    #allocation9 [shape = 's32[1]{0}', space=sflag, size = 0x4, scoped, tag = 'scoped memory for tpu_custom_call.1']
    #allocation10 [shape = 'u8[262144]{0}', space=vmem, size = 0x40000, scoped, tag = 'output window, operand 0']
    %12 = vsyncpa [#allocation3], 0
    %s13 = scalar_lea.sflag [#allocation3], 1
    %14 = vsyncpa %s13, 0
    %15 = vsyncpa [#allocation6], 0
    %16 = vsyncpa [#allocation9], 0
    %17 = vsyncpa [#allocation4], 0
    %s18 = scalar_lea.sflag [#allocation4], 1
    %19 = vsyncpa %s18, 0
    loop: start=0, step=1, limit=4
    $region2: #{tpu_custom_call.1} parent=1 // loop_pre_header
      _
    $region3: #{tpu_custom_call.1} parent=1 // loop_header
      %s21 = sphi 0, %s25
      %p22 = scmp.ge.s32.totalorder %s21, 4
      %s31 = sphi 0, %s33
      %s34 = sphi 0, %s31
      %s35 = sphi 0, %s34
      %s51 = sphi 0, %s35
      %s55 = sphi 0, %s55
      %s57 = sphi 0, %s55
      %s58 = sphi 0, %s57
      %s72 = sphi 0, %s58
      %s76 = sphi 0, %s76
      %s78 = sphi 0, %s76
      %s79 = sphi 0, %s78
      %s93 = sphi 0, %s79
      %s97 = sphi 0, %s97
      %s99 = sphi 0, %s97
      %s100 = sphi 0, %s99
      %s114 = sphi 0, %s100
      %s118 = sphi 0, %s118
      %s120 = sphi 0, %s118
      %s121 = sphi 0, %s120
      %s135 = sphi 0, %s121
      %s139 = sphi 0, %s139
      %s141 = sphi 0, %s139
      %s142 = sphi 0, %s141
      %s156 = sphi 0, %s142
      %s160 = sphi 0, %s160
      %s162 = sphi 0, %s160
      %s163 = sphi 0, %s162
      %s177 = sphi 0, %s163
      %s183 = sphi 0, %s185
      %s186 = sphi 0, %s183
      %s187 = sphi 0, %s186
      %s203 = sphi 0, %s187
    $region4: #{tpu_custom_call.1} parent=1 // loop_header_branch
      %24 = sbr.rel (%p22) target = $region8
    $region5: #{tpu_custom_call.1} parent=1 // loop_body
      %s26 = ssub.s32 %s21, 1
      %s27 = ssub.s32 %s21, 2
      %s28 = sadd.s32 %s21, 1
      %s29 = ssub.s32 %s21, %s28
      %p30 = scmp.eq.s32.totalorder %s29, 0
      %s32 = sadd.s32 %s31, 1
      %s33 = scalar_select %p30, %s31, %s32
      %p36 = pneg %p30
      %p37 = scmp.eq.s32.totalorder %s21, 1
      %p38 = por %p36, %p37
      %p39 = scmp.ne.s32.totalorder %s31, %s34
      %p40 = scmp.eq.s32.totalorder %s21, 0
      %p41 = por %p39, %p40
      %p42 = scmp.ne.s32.totalorder %s31, %s34
      %p43 = scmp.eq.s32.totalorder %s26, 1
      %p44 = por %p42, %p43
      %p45 = scmp.ne.s32.totalorder %s34, %s35
      %p46 = scmp.eq.s32.totalorder %s26, 0
      %p47 = por %p45, %p46
      %p48 = scmp.ne.s32.totalorder %s34, %s35
      %p49 = scmp.eq.s32.totalorder %s27, 1
      %p50 = por %p48, %p49
      %p52 = scmp.ne.s32.totalorder %s35, %s51
      %p53 = scmp.eq.s32.totalorder %s27, 0
      %p54 = por %p52, %p53
      %s56 = sadd.s32 %s55, 1
      %p59 = scmp.eq.s32.totalorder %s21, 1
      %p60 = scmp.ne.s32.totalorder %s55, %s57
      %p61 = scmp.eq.s32.totalorder %s21, 0
      %p62 = por %p60, %p61
      %p63 = scmp.ne.s32.totalorder %s55, %s57
      %p64 = scmp.eq.s32.totalorder %s26, 1
      %p65 = por %p63, %p64
      %p66 = scmp.ne.s32.totalorder %s57, %s58
      %p67 = scmp.eq.s32.totalorder %s26, 0
      %p68 = por %p66, %p67
      %p69 = scmp.ne.s32.totalorder %s57, %s58
      %p70 = scmp.eq.s32.totalorder %s27, 1
      %p71 = por %p69, %p70
      %p73 = scmp.ne.s32.totalorder %s58, %s72
      %p74 = scmp.eq.s32.totalorder %s27, 0
      %p75 = por %p73, %p74
      %s77 = sadd.s32 %s76, 1
      %p80 = scmp.eq.s32.totalorder %s21, 1
      %p81 = scmp.ne.s32.totalorder %s76, %s78
      %p82 = scmp.eq.s32.totalorder %s21, 0
      %p83 = por %p81, %p82
      %p84 = scmp.ne.s32.totalorder %s76, %s78
      %p85 = scmp.eq.s32.totalorder %s26, 1
      %p86 = por %p84, %p85
      %p87 = scmp.ne.s32.totalorder %s78, %s79
      %p88 = scmp.eq.s32.totalorder %s26, 0
      %p89 = por %p87, %p88
      %p90 = scmp.ne.s32.totalorder %s78, %s79
      %p91 = scmp.eq.s32.totalorder %s27, 1
      %p92 = por %p90, %p91
      %p94 = scmp.ne.s32.totalorder %s79, %s93
      %p95 = scmp.eq.s32.totalorder %s27, 0
      %p96 = por %p94, %p95
      %s98 = sadd.s32 %s97, 1
      %p101 = scmp.eq.s32.totalorder %s21, 1
      %p102 = scmp.ne.s32.totalorder %s97, %s99
      %p103 = scmp.eq.s32.totalorder %s21, 0
      %p104 = por %p102, %p103
      %p105 = scmp.ne.s32.totalorder %s97, %s99
      %p106 = scmp.eq.s32.totalorder %s26, 1
      %p107 = por %p105, %p106
      %p108 = scmp.ne.s32.totalorder %s99, %s100
      %p109 = scmp.eq.s32.totalorder %s26, 0
      %p110 = por %p108, %p109
      %p111 = scmp.ne.s32.totalorder %s99, %s100
      %p112 = scmp.eq.s32.totalorder %s27, 1
      %p113 = por %p111, %p112
      %p115 = scmp.ne.s32.totalorder %s100, %s114
      %p116 = scmp.eq.s32.totalorder %s27, 0
      %p117 = por %p115, %p116
      %s119 = sadd.s32 %s118, 1
      %p122 = scmp.eq.s32.totalorder %s21, 1
      %p123 = scmp.ne.s32.totalorder %s118, %s120
      %p124 = scmp.eq.s32.totalorder %s21, 0
      %p125 = por %p123, %p124
      %p126 = scmp.ne.s32.totalorder %s118, %s120
      %p127 = scmp.eq.s32.totalorder %s26, 1
      %p128 = por %p126, %p127
      %p129 = scmp.ne.s32.totalorder %s120, %s121
      %p130 = scmp.eq.s32.totalorder %s26, 0
      %p131 = por %p129, %p130
      %p132 = scmp.ne.s32.totalorder %s120, %s121
      %p133 = scmp.eq.s32.totalorder %s27, 1
      %p134 = por %p132, %p133
      %p136 = scmp.ne.s32.totalorder %s121, %s135
      %p137 = scmp.eq.s32.totalorder %s27, 0
      %p138 = por %p136, %p137
      %s140 = sadd.s32 %s139, 1
      %p143 = scmp.eq.s32.totalorder %s21, 1
      %p144 = scmp.ne.s32.totalorder %s139, %s141
      %p145 = scmp.eq.s32.totalorder %s21, 0
      %p146 = por %p144, %p145
      %p147 = scmp.ne.s32.totalorder %s139, %s141
      %p148 = scmp.eq.s32.totalorder %s26, 1
      %p149 = por %p147, %p148
      %p150 = scmp.ne.s32.totalorder %s141, %s142
      %p151 = scmp.eq.s32.totalorder %s26, 0
      %p152 = por %p150, %p151
      %p153 = scmp.ne.s32.totalorder %s141, %s142
      %p154 = scmp.eq.s32.totalorder %s27, 1
      %p155 = por %p153, %p154
      %p157 = scmp.ne.s32.totalorder %s142, %s156
      %p158 = scmp.eq.s32.totalorder %s27, 0
      %p159 = por %p157, %p158
      %s161 = sadd.s32 %s160, 1
      %p164 = scmp.eq.s32.totalorder %s21, 1
      %p165 = scmp.ne.s32.totalorder %s160, %s162
      %p166 = scmp.eq.s32.totalorder %s21, 0
      %p167 = por %p165, %p166
      %p168 = scmp.ne.s32.totalorder %s160, %s162
      %p169 = scmp.eq.s32.totalorder %s26, 1
      %p170 = por %p168, %p169
      %p171 = scmp.ne.s32.totalorder %s162, %s163
      %p172 = scmp.eq.s32.totalorder %s26, 0
      %p173 = por %p171, %p172
      %p174 = scmp.ne.s32.totalorder %s162, %s163
      %p175 = scmp.eq.s32.totalorder %s27, 1
      %p176 = por %p174, %p175
      %p178 = scmp.ne.s32.totalorder %s163, %s177
      %p179 = scmp.eq.s32.totalorder %s27, 0
      %p180 = por %p178, %p179
      %s181 = ssub.s32 %s21, %s28
      %p182 = scmp.eq.s32.totalorder %s181, 0
      %s184 = sadd.s32 %s183, 1
      %s185 = scalar_select %p182, %s183, %s184
      %p188 = pneg %p182
      %p189 = scmp.eq.s32.totalorder %s21, 1
      %p190 = por %p188, %p189
      %p191 = scmp.ne.s32.totalorder %s183, %s186
      %p192 = scmp.eq.s32.totalorder %s21, 0
      %p193 = por %p191, %p192
      %p194 = scmp.ne.s32.totalorder %s183, %s186
      %p195 = scmp.eq.s32.totalorder %s26, 1
      %p196 = por %p194, %p195
      %p197 = scmp.ne.s32.totalorder %s186, %s187
      %p198 = scmp.eq.s32.totalorder %s26, 0
      %p199 = por %p197, %p198
      %p200 = scmp.ne.s32.totalorder %s186, %s187
      %p201 = scmp.eq.s32.totalorder %s27, 1
      %p202 = por %p200, %p201
      %p204 = scmp.ne.s32.totalorder %s187, %s203
      %p205 = scmp.eq.s32.totalorder %s27, 0
      %p206 = por %p204, %p205
      %p207 = scmp.le.s32.totalorder 1, %s21
      %p208 = scmp.lt.s32.totalorder %s21, 3
      %p209 = pnand %p207, %p208
      %p210 = pneg %p209
      // Predicated region
      $region9: #{tpu_custom_call.1} parent=5 // pred_check
        _
      $region10: #{tpu_custom_call.1} parent=5 // pred_check_branch
        %212 = sbr.rel (%p209) target = $region12
      $region11: #{tpu_custom_call.1} parent=5 // pred_region
        %s213 = ssub.s32 %s21, 1
        // Predicated region
        $region13: #{tpu_custom_call.1} parent=11 // pred_check
          %p214 = pneg %p68
        $region14: #{tpu_custom_call.1} parent=11 // pred_check_branch
          %216 = sbr.rel (%p214) target = $region16
        $region15: #{tpu_custom_call.1} parent=11 // pred_region
          %s218 = ssub.s32 1024, 1024
          %219 = vsyncadd [#allocation6], %s218
          %s220 = sshll.u32 [#allocation5], 4
          %s221 = int_to_ptr.vmem [resolvable:$true] %s220
          %226 = dma.hbm_to_vmem [thread:$0]  %s1, 1024, %s221, [#allocation6], 64, 64, 4
        $region16: #{tpu_custom_call.1} parent=11 // pred_fallthru
          _
        // Predicated region
        $region17: #{tpu_custom_call.1} parent=11 // pred_check
          %p227 = pneg %p89
        $region18: #{tpu_custom_call.1} parent=11 // pred_check_branch
          %229 = sbr.rel (%p227) target = $region20
        $region19: #{tpu_custom_call.1} parent=11 // pred_region
          _
        $region20: #{tpu_custom_call.1} parent=11 // pred_fallthru
          _
        // Predicated region
        $region21: #{tpu_custom_call.1} parent=11 // pred_check
          %p230 = pneg %p110
        $region22: #{tpu_custom_call.1} parent=11 // pred_check_branch
          %232 = sbr.rel (%p230) target = $region24
        $region23: #{tpu_custom_call.1} parent=11 // pred_region
          %s234 = ssub.s32 9216, 9216
          %235 = vsyncadd [#allocation6], %s234
          %s236 = sshll.u32 [#allocation7], 4
          %s237 = int_to_ptr.vmem [resolvable:$true] %s236
          %242 = dma.hbm_to_vmem [thread:$0]  %s3, 9216, %s237, [#allocation6], 64, 64, 4
        $region24: #{tpu_custom_call.1} parent=11 // pred_fallthru
          _
        // Predicated region
        $region25: #{tpu_custom_call.1} parent=11 // pred_check
          %p243 = pneg %p131
        $region26: #{tpu_custom_call.1} parent=11 // pred_check_branch
          %245 = sbr.rel (%p243) target = $region28
        $region27: #{tpu_custom_call.1} parent=11 // pred_region
          _
        $region28: #{tpu_custom_call.1} parent=11 // pred_fallthru
          _
        // Predicated region
        $region29: #{tpu_custom_call.1} parent=11 // pred_check
          %p246 = pneg %p152
        $region30: #{tpu_custom_call.1} parent=11 // pred_check_branch
          %248 = sbr.rel (%p246) target = $region32
        $region31: #{tpu_custom_call.1} parent=11 // pred_region
          %s250 = ssub.s32 1024, 1024
          %251 = vsyncadd [#allocation9], %s250
          %s252 = sshll.u32 [#allocation8], 4
          %s253 = int_to_ptr.vmem [resolvable:$true] %s252
          %258 = dma.hbm_to_vmem [thread:$0]  %s5, 1024, %s253, [#allocation9], 64, 64, 4
        $region32: #{tpu_custom_call.1} parent=11 // pred_fallthru
          _
        // Predicated region
        $region33: #{tpu_custom_call.1} parent=11 // pred_check
          %p259 = pneg %p173
        $region34: #{tpu_custom_call.1} parent=11 // pred_check_branch
          %261 = sbr.rel (%p259) target = $region36
        $region35: #{tpu_custom_call.1} parent=11 // pred_region
          _
        $region36: #{tpu_custom_call.1} parent=11 // pred_fallthru
          _
      $region12: #{tpu_custom_call.1} parent=5 // pred_fallthru
        _
      %p262 = scmp.lt.s32.totalorder %s21, 2
      // Predicated region
      $region37: #{tpu_custom_call.1} parent=5 // pred_check
        %p263 = pneg %p262
      $region38: #{tpu_custom_call.1} parent=5 // pred_check_branch
        %265 = sbr.rel (%p263) target = $region40
      $region39: #{tpu_custom_call.1} parent=5 // pred_region
        // Predicated region
        $region41: #{tpu_custom_call.1} parent=39 // pred_check
          %p266 = pneg %p41
        $region42: #{tpu_custom_call.1} parent=39 // pred_check_branch
          %268 = sbr.rel (%p266) target = $region44
        $region43: #{tpu_custom_call.1} parent=39 // pred_region
          %s269 = sand.u32 %s31, 1
          %s270 = scalar_lea.sflag [#allocation3], %s269
          %s271 = sand.u32 %s31, 1
          %s272 = smul.addr %s271, 128
          %s273 = scalar_lea.vmem [#allocation2], %s272
          %s275 = ssub.s32 2048, 2048
          %276 = vsyncadd %s270, %s275
          %s277 = smul.addr %s21, 32
          %s278 = smul.addr %s277, 64
          %s279 = scalar_lea.hbm %s0, %s278
          %s280 = sshll.u32 %s273, 4
          %s281 = int_to_ptr.vmem [resolvable:$true] %s280
          %286 = dma.hbm_to_vmem [thread:$0]  %s279, 2048, %s281, %s270, 64, 64, 4
        $region44: #{tpu_custom_call.1} parent=39 // pred_fallthru
          _
      $region40: #{tpu_custom_call.1} parent=5 // pred_fallthru
        _
      %p287 = scmp.le.s32.totalorder 1, %s21
      %p288 = scmp.lt.s32.totalorder %s21, 3
      %p289 = pnand %p287, %p288
      %p290 = pneg %p289
      // Predicated region
      $region45: #{tpu_custom_call.1} parent=5 // pred_check
        _
      $region46: #{tpu_custom_call.1} parent=5 // pred_check_branch
        %292 = sbr.rel (%p289) target = $region48
      $region47: #{tpu_custom_call.1} parent=5 // pred_region
        %s293 = ssub.s32 %s21, 1
        %s294 = sand.u32 %s34, 1
        %s295 = scalar_lea.sflag [#allocation3], %s294
        %s296 = sand.u32 %s34, 1
        %s297 = smul.addr %s296, 128
        %s298 = scalar_lea.vmem [#allocation2], %s297
        // Predicated region
        $region49: #{tpu_custom_call.1} parent=47 // pred_check
          %p299 = pneg %p47
        $region50: #{tpu_custom_call.1} parent=47 // pred_check_branch
          %301 = sbr.rel (%p299) target = $region52
        $region51: #{tpu_custom_call.1} parent=47 // pred_region
          %302 = dma.done %s295, 2048
        $region52: #{tpu_custom_call.1} parent=47 // pred_fallthru
          _
        // Predicated region
        $region53: #{tpu_custom_call.1} parent=47 // pred_check
          %p303 = pneg %p68
        $region54: #{tpu_custom_call.1} parent=47 // pred_check_branch
          %305 = sbr.rel (%p303) target = $region56
        $region55: #{tpu_custom_call.1} parent=47 // pred_region
          %306 = dma.done [#allocation6], 1024
        $region56: #{tpu_custom_call.1} parent=47 // pred_fallthru
          _
        // Predicated region
        $region57: #{tpu_custom_call.1} parent=47 // pred_check
          %p307 = pneg %p110
        $region58: #{tpu_custom_call.1} parent=47 // pred_check_branch
          %309 = sbr.rel (%p307) target = $region60
        $region59: #{tpu_custom_call.1} parent=47 // pred_region
          %310 = dma.done [#allocation6], 9216
        $region60: #{tpu_custom_call.1} parent=47 // pred_fallthru
          _
        // Predicated region
        $region61: #{tpu_custom_call.1} parent=47 // pred_check
          %p311 = pneg %p152
        $region62: #{tpu_custom_call.1} parent=47 // pred_check_branch
          %313 = sbr.rel (%p311) target = $region64
        $region63: #{tpu_custom_call.1} parent=47 // pred_region
          %314 = dma.done [#allocation9], 1024
        $region64: #{tpu_custom_call.1} parent=47 // pred_fallthru
          _
        %s315 = sand.u32 %s34, 1
        %s316 = scalar_lea.sflag [#allocation3], %s315
        %s317 = sand.u32 %s34, 1
        %s318 = smul.addr %s317, 128
        %s319 = scalar_lea.vmem [#allocation2], %s318
        %p320 = pneg %p47
        %p321 = pneg %p44
        %p322 = pneg %p68
        %p323 = pneg %p65
        %p324 = pneg %p89
        %p325 = pneg %p86
        %p326 = pneg %p110
        %p327 = pneg %p107
        %p328 = pneg %p131
        %p329 = pneg %p128
        %p330 = pneg %p152
        %p331 = pneg %p149
        %p332 = pneg %p173
        %p333 = pneg %p170
        %p334 = pneg %p199
        %p335 = pneg %p196
        %s336 = sand.u32 %s186, 1
        %s337 = scalar_lea.sflag [#allocation4], %s336
        %s338 = sand.u32 %s186, 1
        %s339 = smul.addr %s338, 256
        %s340 = scalar_lea.vmem [#allocation10], %s339
        %v342 = vld [vmem:[%s298] sm:$0xf]
        %v343 = vld [vmem:[%s298 + $0x4] sm:$0xf]
        %v344 = vld [vmem:[%s298 + $0x8] sm:$0xf]
        %v345 = vld [vmem:[%s298 + $0xc] sm:$0xf]
        %v346 = vld [vmem:[%s298 + $0x10] sm:$0xf]
        %v347 = vld [vmem:[%s298 + $0x14] sm:$0xf]
        %v348 = vld [vmem:[%s298 + $0x18] sm:$0xf]
        %v349 = vld [vmem:[%s298 + $0x1c] sm:$0xf]
        %v350 = vld [vmem:[%s298 + $0x20] sm:$0xf]
        %v351 = vld [vmem:[%s298 + $0x24] sm:$0xf]
        %v352 = vld [vmem:[%s298 + $0x28] sm:$0xf]
        %v353 = vld [vmem:[%s298 + $0x2c] sm:$0xf]
        %v354 = vld [vmem:[%s298 + $0x30] sm:$0xf]
        %v355 = vld [vmem:[%s298 + $0x34] sm:$0xf]
        %v356 = vld [vmem:[%s298 + $0x38] sm:$0xf]
        %v357 = vld [vmem:[%s298 + $0x3c] sm:$0xf]
        %v358 = vld [vmem:[%s298 + $0x40] sm:$0xf]
        %v359 = vld [vmem:[%s298 + $0x44] sm:$0xf]
        %v360 = vld [vmem:[%s298 + $0x48] sm:$0xf]
        %v361 = vld [vmem:[%s298 + $0x4c] sm:$0xf]
        %v362 = vld [vmem:[%s298 + $0x50] sm:$0xf]
        %v363 = vld [vmem:[%s298 + $0x54] sm:$0xf]
        %v364 = vld [vmem:[%s298 + $0x58] sm:$0xf]
        %v365 = vld [vmem:[%s298 + $0x5c] sm:$0xf]
        %v366 = vld [vmem:[%s298 + $0x60] sm:$0xf]
        %v367 = vld [vmem:[%s298 + $0x64] sm:$0xf]
        %v368 = vld [vmem:[%s298 + $0x68] sm:$0xf]
        %v369 = vld [vmem:[%s298 + $0x6c] sm:$0xf]
        %v370 = vld [vmem:[%s298 + $0x70] sm:$0xf]
        %v371 = vld [vmem:[%s298 + $0x74] sm:$0xf]
        %v372 = vld [vmem:[%s298 + $0x78] sm:$0xf]
        %v373 = vld [vmem:[%s298 + $0x7c] sm:$0xf]
        %v374 = vld [vmem:[#allocation5] sm:$0xf]
        %v375 = vld [vmem:[#allocation5 + $0x4] sm:$0xf]
        %v376 = vld [vmem:[#allocation5 + $0x8] sm:$0xf]
        %v377 = vld [vmem:[#allocation5 + $0xc] sm:$0xf]
        %v378 = vld [vmem:[#allocation5 + $0x10] sm:$0xf]
        %v379 = vld [vmem:[#allocation5 + $0x14] sm:$0xf]
        %v380 = vld [vmem:[#allocation5 + $0x18] sm:$0xf]
        %v381 = vld [vmem:[#allocation5 + $0x1c] sm:$0xf]
        %v382 = vld [vmem:[#allocation5 + $0x20] sm:$0xf]
        %v383 = vld [vmem:[#allocation5 + $0x24] sm:$0xf]
        %v384 = vld [vmem:[#allocation5 + $0x28] sm:$0xf]
        %v385 = vld [vmem:[#allocation5 + $0x2c] sm:$0xf]
        %v386 = vld [vmem:[#allocation5 + $0x30] sm:$0xf]
        %v387 = vld [vmem:[#allocation5 + $0x34] sm:$0xf]
        %v388 = vld [vmem:[#allocation5 + $0x38] sm:$0xf]
        %v389 = vld [vmem:[#allocation5 + $0x3c] sm:$0xf]
        %v390 = vld [vmem:[%s2] sm:$0x1]
        %v392 = vlaneseq
        %v393 = vshrl.u32 %v392, 7
        %v394 = vsub.s32 0, %v393
        %v395 = vrot.slane %v390, %v394
        %v429 = vunpack.c.l.b16 %v342
        %v430 = vunpack.c.l.b16 %v343
        %v431 = vunpack.c.l.b16 %v344
        %v432 = vunpack.c.l.b16 %v345
        %v433 = vunpack.c.l.b16 %v346
        %v434 = vunpack.c.l.b16 %v347
        %v435 = vunpack.c.l.b16 %v348
        %v436 = vunpack.c.l.b16 %v349
        %v437 = vunpack.c.l.b16 %v350
        %v438 = vunpack.c.l.b16 %v351
        %v439 = vunpack.c.l.b16 %v352
        %v440 = vunpack.c.l.b16 %v353
        %v441 = vunpack.c.l.b16 %v354
        %v442 = vunpack.c.l.b16 %v355
        %v443 = vunpack.c.l.b16 %v356
        %v444 = vunpack.c.l.b16 %v357
        %v445 = vunpack.c.l.b16 %v358
        %v446 = vunpack.c.l.b16 %v359
        %v447 = vunpack.c.l.b16 %v360
        %v448 = vunpack.c.l.b16 %v361
        %v449 = vunpack.c.l.b16 %v362
        %v450 = vunpack.c.l.b16 %v363
        %v451 = vunpack.c.l.b16 %v364
        %v452 = vunpack.c.l.b16 %v365
        %v453 = vunpack.c.l.b16 %v366
        %v454 = vunpack.c.l.b16 %v367
        %v455 = vunpack.c.l.b16 %v368
        %v456 = vunpack.c.l.b16 %v369
        %v457 = vunpack.c.l.b16 %v370
        %v458 = vunpack.c.l.b16 %v371
        %v459 = vunpack.c.l.b16 %v372
        %v460 = vunpack.c.l.b16 %v373
        %v461 = vpack.c.b16 %v430, %v429
        %v462 = vpack.c.b16 %v432, %v431
        %v463 = vpack.c.b16 %v434, %v433
        %v464 = vpack.c.b16 %v436, %v435
        %v465 = vpack.c.b16 %v438, %v437
        %v466 = vpack.c.b16 %v440, %v439
        %v467 = vpack.c.b16 %v442, %v441
        %v468 = vpack.c.b16 %v444, %v443
        %v469 = vpack.c.b16 %v446, %v445
        %v470 = vpack.c.b16 %v448, %v447
        %v471 = vpack.c.b16 %v450, %v449
        %v472 = vpack.c.b16 %v452, %v451
        %v473 = vpack.c.b16 %v454, %v453
        %v474 = vpack.c.b16 %v456, %v455
        %v475 = vpack.c.b16 %v458, %v457
        %v476 = vpack.c.b16 %v460, %v459
        %v509 = vunpack.c.l.b16 %v374
        %v510 = vunpack.c.l.b16 %v375
        %v511 = vunpack.c.l.b16 %v376
        %v512 = vunpack.c.l.b16 %v377
        %v513 = vunpack.c.l.b16 %v378
        %v514 = vunpack.c.l.b16 %v379
        %v515 = vunpack.c.l.b16 %v380
        %v516 = vunpack.c.l.b16 %v381
        %v517 = vunpack.c.l.b16 %v382
        %v518 = vunpack.c.l.b16 %v383
        %v519 = vunpack.c.l.b16 %v384
        %v520 = vunpack.c.l.b16 %v385
        %v521 = vunpack.c.l.b16 %v386
        %v522 = vunpack.c.l.b16 %v387
        %v523 = vunpack.c.l.b16 %v388
        %v524 = vunpack.c.l.b16 %v389
        %v525 = vpack.c.b16 %v510, %v509
        %v526 = vpack.c.b16 %v512, %v511
        %v527 = vpack.c.b16 %v514, %v513
        %v528 = vpack.c.b16 %v516, %v515
        %v529 = vpack.c.b16 %v518, %v517
        %v530 = vpack.c.b16 %v520, %v519
        %v531 = vpack.c.b16 %v522, %v521
        %v532 = vpack.c.b16 %v524, %v523
        %541 = vmatprep.subr.bf16.mxu0 0
        %542 = vmatpush1.bf16.msra.mxu0 %v532
        %543 = vmatprep.subr.bf16.mxu0 0
        %544 = vmatpush1.bf16.msra.mxu0 %v531
        %545 = vmatprep.subr.bf16.mxu0 0
        %546 = vmatpush1.bf16.msra.mxu0 %v530
        %547 = vmatprep.subr.bf16.mxu0 0
        %548 = vmatpush1.bf16.msra.mxu0 %v529
        %549 = vmatprep.subr.bf16.mxu0 0
        %550 = vmatpush1.bf16.msra.mxu0 %v528
        %551 = vmatprep.subr.bf16.mxu0 0
        %552 = vmatpush1.bf16.msra.mxu0 %v527
        %553 = vmatprep.subr.bf16.mxu0 0
        %554 = vmatpush1.bf16.msra.mxu0 %v526
        %555 = vmatprep.subr.bf16.mxu0 0
        %556 = vmatpush1.bf16.msra.mxu0 %v525
        %557 = vmatprep.subr.bf16.mxu0 0
        %558 = vmatpush2.bf16.msra.mxu0 0
        %559 = vmatprep.subr.bf16.mxu0 0
        %560 = vmatpush2.bf16.msra.mxu0 0
        %561 = vmatprep.subr.bf16.mxu0 0
        %562 = vmatpush2.bf16.msra.mxu0 0
        %563 = vmatprep.subr.bf16.mxu0 0
        %564 = vmatpush2.bf16.msra.mxu0 0
        %565 = vmatprep.subr.bf16.mxu0 0
        %566 = vmatpush2.bf16.msra.mxu0 0
        %567 = vmatprep.subr.bf16.mxu0 0
        %568 = vmatpush2.bf16.msra.mxu0 0
        %569 = vmatprep.subr.bf16.mxu0 0
        %570 = vmatpush2.bf16.msra.mxu0 0
        %571 = vmatprep.subr.bf16.mxu0 0
        %572 = vmatpush2.bf16.msra.mxu0 0
        %573 = vmatprep.mubr.bf16.mxu0 0
        %574 = vmatmul.mubr.bf16.gmra.mxu0 %v461
        %v575 = vpop.f32.mrf.mxu0
        %v576 = vadd.f32 %v395, %v575
        %v577 = vpop.f32.mrf.mxu0
        %v578 = vpop.f32.mrf.mxu0
        %v579 = vadd.f32 %v395, %v578
        %v580 = vpop.f32.mrf.mxu0
        %581 = vmatprep.mubr.bf16.mxu0 0
        %582 = vmatmul.mubr.bf16.gmra.mxu0 %v462
        %v583 = vpop.f32.mrf.mxu0
        %v584 = vadd.f32 %v395, %v583
        %v585 = vpop.f32.mrf.mxu0
        %v586 = vpop.f32.mrf.mxu0
        %v587 = vadd.f32 %v395, %v586
        %v588 = vpop.f32.mrf.mxu0
        %589 = vmatprep.mubr.bf16.mxu0 0
        %590 = vmatmul.mubr.bf16.gmra.mxu0 %v463
        %v591 = vpop.f32.mrf.mxu0
        %v592 = vadd.f32 %v395, %v591
        %v593 = vpop.f32.mrf.mxu0
        %v594 = vpop.f32.mrf.mxu0
        %v595 = vadd.f32 %v395, %v594
        %v596 = vpop.f32.mrf.mxu0
        %597 = vmatprep.mubr.bf16.mxu0 0
        %598 = vmatmul.mubr.bf16.gmra.mxu0 %v464
        %v599 = vpop.f32.mrf.mxu0
        %v600 = vadd.f32 %v395, %v599
        %v601 = vpop.f32.mrf.mxu0
        %v602 = vpop.f32.mrf.mxu0
        %v603 = vadd.f32 %v395, %v602
        %v604 = vpop.f32.mrf.mxu0
        %605 = vmatprep.mubr.bf16.mxu0 0
        %606 = vmatmul.mubr.bf16.gmra.mxu0 %v465
        %v607 = vpop.f32.mrf.mxu0
        %v608 = vadd.f32 %v395, %v607
        %v609 = vpop.f32.mrf.mxu0
        %v610 = vpop.f32.mrf.mxu0
        %v611 = vadd.f32 %v395, %v610
        %v612 = vpop.f32.mrf.mxu0
        %613 = vmatprep.mubr.bf16.mxu0 0
        %614 = vmatmul.mubr.bf16.gmra.mxu0 %v466
        %v615 = vpop.f32.mrf.mxu0
        %v616 = vadd.f32 %v395, %v615
        %v617 = vpop.f32.mrf.mxu0
        %v618 = vpop.f32.mrf.mxu0
        %v619 = vadd.f32 %v395, %v618
        %v620 = vpop.f32.mrf.mxu0
        %621 = vmatprep.mubr.bf16.mxu0 0
        %622 = vmatmul.mubr.bf16.gmra.mxu0 %v467
        %v623 = vpop.f32.mrf.mxu0
        %v624 = vadd.f32 %v395, %v623
        %v625 = vpop.f32.mrf.mxu0
        %v626 = vpop.f32.mrf.mxu0
        %v627 = vadd.f32 %v395, %v626
        %v628 = vpop.f32.mrf.mxu0
        %629 = vmatprep.mubr.bf16.mxu0 0
        %630 = vmatmul.mubr.bf16.gmra.mxu0 %v468
        %v631 = vpop.f32.mrf.mxu0
        %v632 = vadd.f32 %v395, %v631
        %v633 = vpop.f32.mrf.mxu0
        %v634 = vpop.f32.mrf.mxu0
        %v635 = vadd.f32 %v395, %v634
        %v636 = vpop.f32.mrf.mxu0
        %637 = vmatprep.mubr.bf16.mxu0 0
        %638 = vmatmul.mubr.bf16.gmra.mxu0 %v469
        %v639 = vpop.f32.mrf.mxu0
        %v640 = vadd.f32 %v395, %v639
        %v641 = vpop.f32.mrf.mxu0
        %v642 = vpop.f32.mrf.mxu0
        %v643 = vadd.f32 %v395, %v642
        %v644 = vpop.f32.mrf.mxu0
        %645 = vmatprep.mubr.bf16.mxu0 0
        %646 = vmatmul.mubr.bf16.gmra.mxu0 %v470
        %v647 = vpop.f32.mrf.mxu0
        %v648 = vadd.f32 %v395, %v647
        %v649 = vpop.f32.mrf.mxu0
        %v650 = vpop.f32.mrf.mxu0
        %v651 = vadd.f32 %v395, %v650
        %v652 = vpop.f32.mrf.mxu0
        %653 = vmatprep.mubr.bf16.mxu0 0
        %654 = vmatmul.mubr.bf16.gmra.mxu0 %v471
        %v655 = vpop.f32.mrf.mxu0
        %v656 = vadd.f32 %v395, %v655
        %v657 = vpop.f32.mrf.mxu0
        %v658 = vpop.f32.mrf.mxu0
        %v659 = vadd.f32 %v395, %v658
        %v660 = vpop.f32.mrf.mxu0
        %661 = vmatprep.mubr.bf16.mxu0 0
        %662 = vmatmul.mubr.bf16.gmra.mxu0 %v472
        %v663 = vpop.f32.mrf.mxu0
        %v664 = vadd.f32 %v395, %v663
        %v665 = vpop.f32.mrf.mxu0
        %v666 = vpop.f32.mrf.mxu0
        %v667 = vadd.f32 %v395, %v666
        %v668 = vpop.f32.mrf.mxu0
        %669 = vmatprep.mubr.bf16.mxu0 0
        %670 = vmatmul.mubr.bf16.gmra.mxu0 %v473
        %v671 = vpop.f32.mrf.mxu0
        %v672 = vadd.f32 %v395, %v671
        %v673 = vpop.f32.mrf.mxu0
        %v674 = vpop.f32.mrf.mxu0
        %v675 = vadd.f32 %v395, %v674
        %v676 = vpop.f32.mrf.mxu0
        %677 = vmatprep.mubr.bf16.mxu0 0
        %678 = vmatmul.mubr.bf16.gmra.mxu0 %v474
        %v679 = vpop.f32.mrf.mxu0
        %v680 = vadd.f32 %v395, %v679
        %v681 = vpop.f32.mrf.mxu0
        %v682 = vpop.f32.mrf.mxu0
        %v683 = vadd.f32 %v395, %v682
        %v684 = vpop.f32.mrf.mxu0
        %685 = vmatprep.mubr.bf16.mxu0 0
        %686 = vmatmul.mubr.bf16.gmra.mxu0 %v475
        %v687 = vpop.f32.mrf.mxu0
        %v688 = vadd.f32 %v395, %v687
        %v689 = vpop.f32.mrf.mxu0
        %v690 = vpop.f32.mrf.mxu0
        %v691 = vadd.f32 %v395, %v690
        %v692 = vpop.f32.mrf.mxu0
        %693 = vmatprep.mubr.bf16.mxu0 0
        %694 = vmatmul.mubr.bf16.gmra.mxu0 %v476
        %v695 = vpop.f32.mrf.mxu0
        %v696 = vadd.f32 %v395, %v695
        %v697 = vpop.f32.mrf.mxu0
        %v698 = vpop.f32.mrf.mxu0
        %v699 = vadd.f32 %v395, %v698
        %v700 = vpop.f32.mrf.mxu0
        %701 = vdwg.mxu0
        %v702 = vmax.f32 %v576, 0.0
        %v703 = vmax.f32 %v579, 0.0
        %v704 = vmax.f32 %v584, 0.0
        %v705 = vmax.f32 %v587, 0.0
        %v706 = vmax.f32 %v592, 0.0
        %v707 = vmax.f32 %v595, 0.0
        %v708 = vmax.f32 %v600, 0.0
        %v709 = vmax.f32 %v603, 0.0
        %v710 = vmax.f32 %v608, 0.0
        %v711 = vmax.f32 %v611, 0.0
        %v712 = vmax.f32 %v616, 0.0
        %v713 = vmax.f32 %v619, 0.0
        %v714 = vmax.f32 %v624, 0.0
        %v715 = vmax.f32 %v627, 0.0
        %v716 = vmax.f32 %v632, 0.0
        %v717 = vmax.f32 %v635, 0.0
        %v718 = vmax.f32 %v640, 0.0
        %v719 = vmax.f32 %v643, 0.0
        %v720 = vmax.f32 %v648, 0.0
        %v721 = vmax.f32 %v651, 0.0
        %v722 = vmax.f32 %v656, 0.0
        %v723 = vmax.f32 %v659, 0.0
        %v724 = vmax.f32 %v664, 0.0
        %v725 = vmax.f32 %v667, 0.0
        %v726 = vmax.f32 %v672, 0.0
        %v727 = vmax.f32 %v675, 0.0
        %v728 = vmax.f32 %v680, 0.0
        %v729 = vmax.f32 %v683, 0.0
        %v730 = vmax.f32 %v688, 0.0
        %v731 = vmax.f32 %v691, 0.0
        %v732 = vmax.f32 %v696, 0.0
        %v733 = vmax.f32 %v699, 0.0
        %v734 = vlaneseq
        %v735 = vshrl.u32 %v734, 7
        %v736 = vadd.s32 %v735, 8
        %vm737 = vcmp.ge.s32.totalorder %v735, 1
        %vm738 = vcmp.ge.s32.totalorder %v736, 1
        %v739 = vrot.slane %v702, 7
        %v740 = vrot.slane %v704, 7
        %v741 = vrot.slane %v706, 7
        %v742 = vrot.slane %v708, 7
        %v743 = vrot.slane %v710, 7
        %v744 = vrot.slane %v712, 7
        %v745 = vrot.slane %v714, 7
        %v746 = vrot.slane %v716, 7
        %v747 = vrot.slane %v718, 7
        %v748 = vrot.slane %v720, 7
        %v749 = vrot.slane %v722, 7
        %v750 = vrot.slane %v724, 7
        %v751 = vrot.slane %v726, 7
        %v752 = vrot.slane %v728, 7
        %v753 = vrot.slane %v730, 7
        %v754 = vrot.slane %v732, 7
        %v755 = vrot.slane %v703, 7
        %v756 = vrot.slane %v705, 7
        %v757 = vrot.slane %v707, 7
        %v758 = vrot.slane %v709, 7
        %v759 = vrot.slane %v711, 7
        %v760 = vrot.slane %v713, 7
        %v761 = vrot.slane %v715, 7
        %v762 = vrot.slane %v717, 7
        %v763 = vrot.slane %v719, 7
        %v764 = vrot.slane %v721, 7
        %v765 = vrot.slane %v723, 7
        %v766 = vrot.slane %v725, 7
        %v767 = vrot.slane %v727, 7
        %v768 = vrot.slane %v729, 7
        %v769 = vrot.slane %v731, 7
        %v770 = vrot.slane %v733, 7
        %vm771 = vcmp.lt.s32.totalorder %v735, 1
        %v772 = vsel %vm771, %v739, %v755
        %v773 = vsel %vm771, %v740, %v756
        %v774 = vsel %vm771, %v741, %v757
        %v775 = vsel %vm771, %v742, %v758
        %v776 = vsel %vm771, %v743, %v759
        %v777 = vsel %vm771, %v744, %v760
        %v778 = vsel %vm771, %v745, %v761
        %v779 = vsel %vm771, %v746, %v762
        %v780 = vsel %vm771, %v747, %v763
        %v781 = vsel %vm771, %v748, %v764
        %v782 = vsel %vm771, %v749, %v765
        %v783 = vsel %vm771, %v750, %v766
        %v784 = vsel %vm771, %v751, %v767
        %v785 = vsel %vm771, %v752, %v768
        %v786 = vsel %vm771, %v753, %v769
        %v787 = vsel %vm771, %v754, %v770
        %v788 = vsel %vm771, %v755, %v739
        %v789 = vsel %vm771, %v756, %v740
        %v790 = vsel %vm771, %v757, %v741
        %v791 = vsel %vm771, %v758, %v742
        %v792 = vsel %vm771, %v759, %v743
        %v793 = vsel %vm771, %v760, %v744
        %v794 = vsel %vm771, %v761, %v745
        %v795 = vsel %vm771, %v762, %v746
        %v796 = vsel %vm771, %v763, %v747
        %v797 = vsel %vm771, %v764, %v748
        %v798 = vsel %vm771, %v765, %v749
        %v799 = vsel %vm771, %v766, %v750
        %v800 = vsel %vm771, %v767, %v751
        %v801 = vsel %vm771, %v768, %v752
        %v802 = vsel %vm771, %v769, %v753
        %v803 = vsel %vm771, %v770, %v754
        %v804 = vsel %vm737, 1, 0
        %v805 = vsel %vm738, 1, 0
        %vm806 = vcmp.eq.s32.totalorder %v804, 1
        %vm807 = vcmp.eq.s32.totalorder %v805, 1
        %v808 = vsel %vm806, %v788, 0.0
        %v809 = vsel %vm807, %v772, 0.0
        %v810 = vsel %vm806, %v789, 0.0
        %v811 = vsel %vm807, %v773, 0.0
        %v812 = vsel %vm806, %v790, 0.0
        %v813 = vsel %vm807, %v774, 0.0
        %v814 = vsel %vm806, %v791, 0.0
        %v815 = vsel %vm807, %v775, 0.0
        %v816 = vsel %vm806, %v792, 0.0
        %v817 = vsel %vm807, %v776, 0.0
        %v818 = vsel %vm806, %v793, 0.0
        %v819 = vsel %vm807, %v777, 0.0
        %v820 = vsel %vm806, %v794, 0.0
        %v821 = vsel %vm807, %v778, 0.0
        %v822 = vsel %vm806, %v795, 0.0
        %v823 = vsel %vm807, %v779, 0.0
        %v824 = vsel %vm806, %v796, 0.0
        %v825 = vsel %vm807, %v780, 0.0
        %v826 = vsel %vm806, %v797, 0.0
        %v827 = vsel %vm807, %v781, 0.0
        %v828 = vsel %vm806, %v798, 0.0
        %v829 = vsel %vm807, %v782, 0.0
        %v830 = vsel %vm806, %v799, 0.0
        %v831 = vsel %vm807, %v783, 0.0
        %v832 = vsel %vm806, %v800, 0.0
        %v833 = vsel %vm807, %v784, 0.0
        %v834 = vsel %vm806, %v801, 0.0
        %v835 = vsel %vm807, %v785, 0.0
        %v836 = vsel %vm806, %v802, 0.0
        %v837 = vsel %vm807, %v786, 0.0
        %v838 = vsel %vm806, %v803, 0.0
        %v839 = vsel %vm807, %v787, 0.0
        %vm840 = vcmp.le.s32.totalorder %v735, 14
        %vm841 = vcmp.le.s32.totalorder %v736, 14
        %v842 = vrot.slane %v702, 1
        %v843 = vrot.slane %v704, 1
        %v844 = vrot.slane %v706, 1
        %v845 = vrot.slane %v708, 1
        %v846 = vrot.slane %v710, 1
        %v847 = vrot.slane %v712, 1
        %v848 = vrot.slane %v714, 1
        %v849 = vrot.slane %v716, 1
        %v850 = vrot.slane %v718, 1
        %v851 = vrot.slane %v720, 1
        %v852 = vrot.slane %v722, 1
        %v853 = vrot.slane %v724, 1
        %v854 = vrot.slane %v726, 1
        %v855 = vrot.slane %v728, 1
        %v856 = vrot.slane %v730, 1
        %v857 = vrot.slane %v732, 1
        %v858 = vrot.slane %v703, 1
        %v859 = vrot.slane %v705, 1
        %v860 = vrot.slane %v707, 1
        %v861 = vrot.slane %v709, 1
        %v862 = vrot.slane %v711, 1
        %v863 = vrot.slane %v713, 1
        %v864 = vrot.slane %v715, 1
        %v865 = vrot.slane %v717, 1
        %v866 = vrot.slane %v719, 1
        %v867 = vrot.slane %v721, 1
        %v868 = vrot.slane %v723, 1
        %v869 = vrot.slane %v725, 1
        %v870 = vrot.slane %v727, 1
        %v871 = vrot.slane %v729, 1
        %v872 = vrot.slane %v731, 1
        %v873 = vrot.slane %v733, 1
        %vm874 = vcmp.lt.s32.totalorder %v735, 7
        %v875 = vsel %vm874, %v842, %v858
        %v876 = vsel %vm874, %v843, %v859
        %v877 = vsel %vm874, %v844, %v860
        %v878 = vsel %vm874, %v845, %v861
        %v879 = vsel %vm874, %v846, %v862
        %v880 = vsel %vm874, %v847, %v863
        %v881 = vsel %vm874, %v848, %v864
        %v882 = vsel %vm874, %v849, %v865
        %v883 = vsel %vm874, %v850, %v866
        %v884 = vsel %vm874, %v851, %v867
        %v885 = vsel %vm874, %v852, %v868
        %v886 = vsel %vm874, %v853, %v869
        %v887 = vsel %vm874, %v854, %v870
        %v888 = vsel %vm874, %v855, %v871
        %v889 = vsel %vm874, %v856, %v872
        %v890 = vsel %vm874, %v857, %v873
        %v891 = vsel %vm874, %v858, %v842
        %v892 = vsel %vm874, %v859, %v843
        %v893 = vsel %vm874, %v860, %v844
        %v894 = vsel %vm874, %v861, %v845
        %v895 = vsel %vm874, %v862, %v846
        %v896 = vsel %vm874, %v863, %v847
        %v897 = vsel %vm874, %v864, %v848
        %v898 = vsel %vm874, %v865, %v849
        %v899 = vsel %vm874, %v866, %v850
        %v900 = vsel %vm874, %v867, %v851
        %v901 = vsel %vm874, %v868, %v852
        %v902 = vsel %vm874, %v869, %v853
        %v903 = vsel %vm874, %v870, %v854
        %v904 = vsel %vm874, %v871, %v855
        %v905 = vsel %vm874, %v872, %v856
        %v906 = vsel %vm874, %v873, %v857
        %v907 = vsel %vm840, 1, 0
        %v908 = vsel %vm841, 1, 0
        %vm909 = vcmp.eq.s32.totalorder %v907, 1
        %vm910 = vcmp.eq.s32.totalorder %v908, 1
        %v911 = vsel %vm909, %v875, 0.0
        %v912 = vsel %vm910, %v891, 0.0
        %v913 = vsel %vm909, %v876, 0.0
        %v914 = vsel %vm910, %v892, 0.0
        %v915 = vsel %vm909, %v877, 0.0
        %v916 = vsel %vm910, %v893, 0.0
        %v917 = vsel %vm909, %v878, 0.0
        %v918 = vsel %vm910, %v894, 0.0
        %v919 = vsel %vm909, %v879, 0.0
        %v920 = vsel %vm910, %v895, 0.0
        %v921 = vsel %vm909, %v880, 0.0
        %v922 = vsel %vm910, %v896, 0.0
        %v923 = vsel %vm909, %v881, 0.0
        %v924 = vsel %vm910, %v897, 0.0
        %v925 = vsel %vm909, %v882, 0.0
        %v926 = vsel %vm910, %v898, 0.0
        %v927 = vsel %vm909, %v883, 0.0
        %v928 = vsel %vm910, %v899, 0.0
        %v929 = vsel %vm909, %v884, 0.0
        %v930 = vsel %vm910, %v900, 0.0
        %v931 = vsel %vm909, %v885, 0.0
        %v932 = vsel %vm910, %v901, 0.0
        %v933 = vsel %vm909, %v886, 0.0
        %v934 = vsel %vm910, %v902, 0.0
        %v935 = vsel %vm909, %v887, 0.0
        %v936 = vsel %vm910, %v903, 0.0
        %v937 = vsel %vm909, %v888, 0.0
        %v938 = vsel %vm910, %v904, 0.0
        %v939 = vsel %vm909, %v889, 0.0
        %v940 = vsel %vm910, %v905, 0.0
        %v941 = vsel %vm909, %v890, 0.0
        %v942 = vsel %vm910, %v906, 0.0
        %v943 = vpack.c.bf16 %v809, %v808
        %v944 = vpack.c.bf16 %v811, %v810
        %v945 = vpack.c.bf16 %v813, %v812
        %v946 = vpack.c.bf16 %v815, %v814
        %v947 = vpack.c.bf16 %v817, %v816
        %v948 = vpack.c.bf16 %v819, %v818
        %v949 = vpack.c.bf16 %v821, %v820
        %v950 = vpack.c.bf16 %v823, %v822
        %v951 = vpack.c.bf16 %v825, %v824
        %v952 = vpack.c.bf16 %v827, %v826
        %v953 = vpack.c.bf16 %v829, %v828
        %v954 = vpack.c.bf16 %v831, %v830
        %v955 = vpack.c.bf16 %v833, %v832
        %v956 = vpack.c.bf16 %v835, %v834
        %v957 = vpack.c.bf16 %v837, %v836
        %v958 = vpack.c.bf16 %v839, %v838
        %v959 = vpack.c.bf16 %v703, %v702
        %v960 = vpack.c.bf16 %v705, %v704
        %v961 = vpack.c.bf16 %v707, %v706
        %v962 = vpack.c.bf16 %v709, %v708
        %v963 = vpack.c.bf16 %v711, %v710
        %v964 = vpack.c.bf16 %v713, %v712
        %v965 = vpack.c.bf16 %v715, %v714
        %v966 = vpack.c.bf16 %v717, %v716
        %v967 = vpack.c.bf16 %v719, %v718
        %v968 = vpack.c.bf16 %v721, %v720
        %v969 = vpack.c.bf16 %v723, %v722
        %v970 = vpack.c.bf16 %v725, %v724
        %v971 = vpack.c.bf16 %v727, %v726
        %v972 = vpack.c.bf16 %v729, %v728
        %v973 = vpack.c.bf16 %v731, %v730
        %v974 = vpack.c.bf16 %v733, %v732
        %v975 = vpack.c.bf16 %v912, %v911
        %v976 = vpack.c.bf16 %v914, %v913
        %v977 = vpack.c.bf16 %v916, %v915
        %v978 = vpack.c.bf16 %v918, %v917
        %v979 = vpack.c.bf16 %v920, %v919
        %v980 = vpack.c.bf16 %v922, %v921
        %v981 = vpack.c.bf16 %v924, %v923
        %v982 = vpack.c.bf16 %v926, %v925
        %v983 = vpack.c.bf16 %v928, %v927
        %v984 = vpack.c.bf16 %v930, %v929
        %v985 = vpack.c.bf16 %v932, %v931
        %v986 = vpack.c.bf16 %v934, %v933
        %v987 = vpack.c.bf16 %v936, %v935
        %v988 = vpack.c.bf16 %v938, %v937
        %v989 = vpack.c.bf16 %v940, %v939
        %v990 = vpack.c.bf16 %v942, %v941
        %v991 = vld [vmem:[#allocation7] sm:$0xf]
        %v992 = vld [vmem:[#allocation7 + $0x4] sm:$0xf]
        %v993 = vld [vmem:[#allocation7 + $0x8] sm:$0xf]
        %v994 = vld [vmem:[#allocation7 + $0xc] sm:$0xf]
        %v995 = vld [vmem:[#allocation7 + $0x10] sm:$0xf]
        %v996 = vld [vmem:[#allocation7 + $0x14] sm:$0xf]
        %v997 = vld [vmem:[#allocation7 + $0x18] sm:$0xf]
        %v998 = vld [vmem:[#allocation7 + $0x1c] sm:$0xf]
        %v999 = vld [vmem:[#allocation7 + $0x20] sm:$0xf]
        %v1000 = vld [vmem:[#allocation7 + $0x24] sm:$0xf]
        %v1001 = vld [vmem:[#allocation7 + $0x28] sm:$0xf]
        %v1002 = vld [vmem:[#allocation7 + $0x2c] sm:$0xf]
        %v1003 = vld [vmem:[#allocation7 + $0x30] sm:$0xf]
        %v1004 = vld [vmem:[#allocation7 + $0x34] sm:$0xf]
        %v1005 = vld [vmem:[#allocation7 + $0x38] sm:$0xf]
        %v1006 = vld [vmem:[#allocation7 + $0x3c] sm:$0xf]
        %v1007 = vld [vmem:[#allocation7 + $0x40] sm:$0xf]
        %v1008 = vld [vmem:[#allocation7 + $0x44] sm:$0xf]
        %v1009 = vld [vmem:[#allocation7 + $0x48] sm:$0xf]
        %v1010 = vld [vmem:[#allocation7 + $0x4c] sm:$0xf]
        %v1011 = vld [vmem:[#allocation7 + $0x50] sm:$0xf]
        %v1012 = vld [vmem:[#allocation7 + $0x54] sm:$0xf]
        %v1013 = vld [vmem:[#allocation7 + $0x58] sm:$0xf]
        %v1014 = vld [vmem:[#allocation7 + $0x5c] sm:$0xf]
        %v1015 = vld [vmem:[#allocation7 + $0x60] sm:$0xf]
        %v1016 = vld [vmem:[#allocation7 + $0x64] sm:$0xf]
        %v1017 = vld [vmem:[#allocation7 + $0x68] sm:$0xf]
        %v1018 = vld [vmem:[#allocation7 + $0x6c] sm:$0xf]
        %v1019 = vld [vmem:[#allocation7 + $0x70] sm:$0xf]
        %v1020 = vld [vmem:[#allocation7 + $0x74] sm:$0xf]
        %v1021 = vld [vmem:[#allocation7 + $0x78] sm:$0xf]
        %v1022 = vld [vmem:[#allocation7 + $0x7c] sm:$0xf]
        %v1023 = vld [vmem:[#allocation7 + $0x80] sm:$0xf]
        %v1024 = vld [vmem:[#allocation7 + $0x84] sm:$0xf]
        %v1025 = vld [vmem:[#allocation7 + $0x88] sm:$0xf]
        %v1026 = vld [vmem:[#allocation7 + $0x8c] sm:$0xf]
        %v1027 = vld [vmem:[#allocation7 + $0x90] sm:$0xf]
        %v1028 = vld [vmem:[#allocation7 + $0x94] sm:$0xf]
        %v1029 = vld [vmem:[#allocation7 + $0x98] sm:$0xf]
        %v1030 = vld [vmem:[#allocation7 + $0x9c] sm:$0xf]
        %v1031 = vld [vmem:[#allocation7 + $0xa0] sm:$0xf]
        %v1032 = vld [vmem:[#allocation7 + $0xa4] sm:$0xf]
        %v1033 = vld [vmem:[#allocation7 + $0xa8] sm:$0xf]
        %v1034 = vld [vmem:[#allocation7 + $0xac] sm:$0xf]
        %v1035 = vld [vmem:[#allocation7 + $0xb0] sm:$0xf]
        %v1036 = vld [vmem:[#allocation7 + $0xb4] sm:$0xf]
        %v1037 = vld [vmem:[#allocation7 + $0xb8] sm:$0xf]
        %v1038 = vld [vmem:[#allocation7 + $0xbc] sm:$0xf]
        %s1039 = scalar_lea.vmem [#allocation7], 192
        %v1040 = vld [vmem:[%s1039] sm:$0xf]
        %v1041 = vld [vmem:[%s1039 + $0x4] sm:$0xf]
        %v1042 = vld [vmem:[%s1039 + $0x8] sm:$0xf]
        %v1043 = vld [vmem:[%s1039 + $0xc] sm:$0xf]
        %v1044 = vld [vmem:[%s1039 + $0x10] sm:$0xf]
        %v1045 = vld [vmem:[%s1039 + $0x14] sm:$0xf]
        %v1046 = vld [vmem:[%s1039 + $0x18] sm:$0xf]
        %v1047 = vld [vmem:[%s1039 + $0x1c] sm:$0xf]
        %v1048 = vld [vmem:[%s1039 + $0x20] sm:$0xf]
        %v1049 = vld [vmem:[%s1039 + $0x24] sm:$0xf]
        %v1050 = vld [vmem:[%s1039 + $0x28] sm:$0xf]
        %v1051 = vld [vmem:[%s1039 + $0x2c] sm:$0xf]
        %v1052 = vld [vmem:[%s1039 + $0x30] sm:$0xf]
        %v1053 = vld [vmem:[%s1039 + $0x34] sm:$0xf]
        %v1054 = vld [vmem:[%s1039 + $0x38] sm:$0xf]
        %v1055 = vld [vmem:[%s1039 + $0x3c] sm:$0xf]
        %v1056 = vld [vmem:[%s1039 + $0x40] sm:$0xf]
        %v1057 = vld [vmem:[%s1039 + $0x44] sm:$0xf]
        %v1058 = vld [vmem:[%s1039 + $0x48] sm:$0xf]
        %v1059 = vld [vmem:[%s1039 + $0x4c] sm:$0xf]
        %v1060 = vld [vmem:[%s1039 + $0x50] sm:$0xf]
        %v1061 = vld [vmem:[%s1039 + $0x54] sm:$0xf]
        %v1062 = vld [vmem:[%s1039 + $0x58] sm:$0xf]
        %v1063 = vld [vmem:[%s1039 + $0x5c] sm:$0xf]
        %v1064 = vld [vmem:[%s1039 + $0x60] sm:$0xf]
        %v1065 = vld [vmem:[%s1039 + $0x64] sm:$0xf]
        %v1066 = vld [vmem:[%s1039 + $0x68] sm:$0xf]
        %v1067 = vld [vmem:[%s1039 + $0x6c] sm:$0xf]
        %v1068 = vld [vmem:[%s1039 + $0x70] sm:$0xf]
        %v1069 = vld [vmem:[%s1039 + $0x74] sm:$0xf]
        %v1070 = vld [vmem:[%s1039 + $0x78] sm:$0xf]
        %v1071 = vld [vmem:[%s1039 + $0x7c] sm:$0xf]
        %v1072 = vld [vmem:[%s1039 + $0x80] sm:$0xf]
        %v1073 = vld [vmem:[%s1039 + $0x84] sm:$0xf]
        %v1074 = vld [vmem:[%s1039 + $0x88] sm:$0xf]
        %v1075 = vld [vmem:[%s1039 + $0x8c] sm:$0xf]
        %v1076 = vld [vmem:[%s1039 + $0x90] sm:$0xf]
        %v1077 = vld [vmem:[%s1039 + $0x94] sm:$0xf]
        %v1078 = vld [vmem:[%s1039 + $0x98] sm:$0xf]
        %v1079 = vld [vmem:[%s1039 + $0x9c] sm:$0xf]
        %v1080 = vld [vmem:[%s1039 + $0xa0] sm:$0xf]
        %v1081 = vld [vmem:[%s1039 + $0xa4] sm:$0xf]
        %v1082 = vld [vmem:[%s1039 + $0xa8] sm:$0xf]
        %v1083 = vld [vmem:[%s1039 + $0xac] sm:$0xf]
        %v1084 = vld [vmem:[%s1039 + $0xb0] sm:$0xf]
        %v1085 = vld [vmem:[%s1039 + $0xb4] sm:$0xf]
        %v1086 = vld [vmem:[%s1039 + $0xb8] sm:$0xf]
        %v1087 = vld [vmem:[%s1039 + $0xbc] sm:$0xf]
        %v1136 = vunpack.c.l.b16 %v1040
        %v1137 = vunpack.c.l.b16 %v1041
        %v1138 = vunpack.c.l.b16 %v1042
        %v1139 = vunpack.c.l.b16 %v1043
        %v1140 = vunpack.c.l.b16 %v1044
        %v1141 = vunpack.c.l.b16 %v1045
        %v1142 = vunpack.c.l.b16 %v1046
        %v1143 = vunpack.c.l.b16 %v1047
        %v1144 = vunpack.c.l.b16 %v1048
        %v1145 = vunpack.c.l.b16 %v1049
        %v1146 = vunpack.c.l.b16 %v1050
        %v1147 = vunpack.c.l.b16 %v1051
        %v1148 = vunpack.c.l.b16 %v1052
        %v1149 = vunpack.c.l.b16 %v1053
        %v1150 = vunpack.c.l.b16 %v1054
        %v1151 = vunpack.c.l.b16 %v1055
        %v1152 = vunpack.c.l.b16 %v1056
        %v1153 = vunpack.c.l.b16 %v1057
        %v1154 = vunpack.c.l.b16 %v1058
        %v1155 = vunpack.c.l.b16 %v1059
        %v1156 = vunpack.c.l.b16 %v1060
        %v1157 = vunpack.c.l.b16 %v1061
        %v1158 = vunpack.c.l.b16 %v1062
        %v1159 = vunpack.c.l.b16 %v1063
        %v1160 = vunpack.c.l.b16 %v1064
        %v1161 = vunpack.c.l.b16 %v1065
        %v1162 = vunpack.c.l.b16 %v1066
        %v1163 = vunpack.c.l.b16 %v1067
        %v1164 = vunpack.c.l.b16 %v1068
        %v1165 = vunpack.c.l.b16 %v1069
        %v1166 = vunpack.c.l.b16 %v1070
        %v1167 = vunpack.c.l.b16 %v1071
        %v1168 = vunpack.c.l.b16 %v1072
        %v1169 = vunpack.c.l.b16 %v1073
        %v1170 = vunpack.c.l.b16 %v1074
        %v1171 = vunpack.c.l.b16 %v1075
        %v1172 = vunpack.c.l.b16 %v1076
        %v1173 = vunpack.c.l.b16 %v1077
        %v1174 = vunpack.c.l.b16 %v1078
        %v1175 = vunpack.c.l.b16 %v1079
        %v1176 = vunpack.c.l.b16 %v1080
        %v1177 = vunpack.c.l.b16 %v1081
        %v1178 = vunpack.c.l.b16 %v1082
        %v1179 = vunpack.c.l.b16 %v1083
        %v1180 = vunpack.c.l.b16 %v1084
        %v1181 = vunpack.c.l.b16 %v1085
        %v1182 = vunpack.c.l.b16 %v1086
        %v1183 = vunpack.c.l.b16 %v1087
        %v1184 = vpack.c.b16 %v1137, %v1136
        %v1185 = vpack.c.b16 %v1139, %v1138
        %v1186 = vpack.c.b16 %v1141, %v1140
        %v1187 = vpack.c.b16 %v1143, %v1142
        %v1188 = vpack.c.b16 %v1145, %v1144
        %v1189 = vpack.c.b16 %v1147, %v1146
        %v1190 = vpack.c.b16 %v1149, %v1148
        %v1191 = vpack.c.b16 %v1151, %v1150
        %v1192 = vpack.c.b16 %v1153, %v1152
        %v1193 = vpack.c.b16 %v1155, %v1154
        %v1194 = vpack.c.b16 %v1157, %v1156
        %v1195 = vpack.c.b16 %v1159, %v1158
        %v1196 = vpack.c.b16 %v1161, %v1160
        %v1197 = vpack.c.b16 %v1163, %v1162
        %v1198 = vpack.c.b16 %v1165, %v1164
        %v1199 = vpack.c.b16 %v1167, %v1166
        %v1200 = vpack.c.b16 %v1169, %v1168
        %v1201 = vpack.c.b16 %v1171, %v1170
        %v1202 = vpack.c.b16 %v1173, %v1172
        %v1203 = vpack.c.b16 %v1175, %v1174
        %v1204 = vpack.c.b16 %v1177, %v1176
        %v1205 = vpack.c.b16 %v1179, %v1178
        %v1206 = vpack.c.b16 %v1181, %v1180
        %v1207 = vpack.c.b16 %v1183, %v1182
        %1232 = vmatprep.subr.bf16.mxu0 0
        %1233 = vmatpush1.bf16.msra.mxu0 %v1191
        %1234 = vmatprep.subr.bf16.mxu0 0
        %1235 = vmatpush1.bf16.msra.mxu0 %v1190
        %1236 = vmatprep.subr.bf16.mxu0 0
        %1237 = vmatpush1.bf16.msra.mxu0 %v1189
        %1238 = vmatprep.subr.bf16.mxu0 0
        %1239 = vmatpush1.bf16.msra.mxu0 %v1188
        %1240 = vmatprep.subr.bf16.mxu0 0
        %1241 = vmatpush1.bf16.msra.mxu0 %v1187
        %1242 = vmatprep.subr.bf16.mxu0 0
        %1243 = vmatpush1.bf16.msra.mxu0 %v1186
        %1244 = vmatprep.subr.bf16.mxu0 0
        %1245 = vmatpush1.bf16.msra.mxu0 %v1185
        %1246 = vmatprep.subr.bf16.mxu0 0
        %1247 = vmatpush1.bf16.msra.mxu0 %v1184
        %1248 = vmatprep.subr.bf16.mxu0 0
        %1249 = vmatpush2.bf16.msra.mxu0 %v1199
        %1250 = vmatprep.subr.bf16.mxu0 0
        %1251 = vmatpush2.bf16.msra.mxu0 %v1198
        %1252 = vmatprep.subr.bf16.mxu0 0
        %1253 = vmatpush2.bf16.msra.mxu0 %v1197
        %1254 = vmatprep.subr.bf16.mxu0 0
        %1255 = vmatpush2.bf16.msra.mxu0 %v1196
        %1256 = vmatprep.subr.bf16.mxu0 0
        %1257 = vmatpush2.bf16.msra.mxu0 %v1195
        %1258 = vmatprep.subr.bf16.mxu0 0
        %1259 = vmatpush2.bf16.msra.mxu0 %v1194
        %1260 = vmatprep.subr.bf16.mxu0 0
        %1261 = vmatpush2.bf16.msra.mxu0 %v1193
        %1262 = vmatprep.subr.bf16.mxu0 0
        %1263 = vmatpush2.bf16.msra.mxu0 %v1192
        %1264 = vmatprep.mubr.bf16.mxu0 %v959
        %1265 = vmatmul.mubr.bf16.gmra.mxu0 0
        %v1266 = vpop.f32.mrf.mxu0
        %v1267 = vadd.f32 0.0, %v1266
        %v1268 = vpop.f32.mrf.mxu0
        %v1269 = vpop.f32.mrf.mxu0
        %v1270 = vadd.f32 0.0, %v1269
        %v1271 = vpop.f32.mrf.mxu0
        %1272 = vmatprep.mubr.bf16.mxu0 %v960
        %1273 = vmatmul.mubr.bf16.gmra.mxu0 %v959
        %v1274 = vpop.f32.mrf.mxu0
        %v1275 = vadd.f32 0.0, %v1274
        %v1276 = vpop.f32.mrf.mxu0
        %v1277 = vpop.f32.mrf.mxu0
        %v1278 = vadd.f32 0.0, %v1277
        %v1279 = vpop.f32.mrf.mxu0
        %1280 = vmatprep.mubr.bf16.mxu0 %v961
        %1281 = vmatmul.mubr.bf16.gmra.mxu0 %v960
        %v1282 = vpop.f32.mrf.mxu0
        %v1283 = vadd.f32 0.0, %v1282
        %v1284 = vpop.f32.mrf.mxu0
        %v1285 = vpop.f32.mrf.mxu0
        %v1286 = vadd.f32 0.0, %v1285
        %v1287 = vpop.f32.mrf.mxu0
        %1288 = vmatprep.mubr.bf16.mxu0 %v962
        %1289 = vmatmul.mubr.bf16.gmra.mxu0 %v961
        %v1290 = vpop.f32.mrf.mxu0
        %v1291 = vadd.f32 0.0, %v1290
        %v1292 = vpop.f32.mrf.mxu0
        %v1293 = vpop.f32.mrf.mxu0
        %v1294 = vadd.f32 0.0, %v1293
        %v1295 = vpop.f32.mrf.mxu0
        %1296 = vmatprep.mubr.bf16.mxu0 %v963
        %1297 = vmatmul.mubr.bf16.gmra.mxu0 %v962
        %v1298 = vpop.f32.mrf.mxu0
        %v1299 = vadd.f32 0.0, %v1298
        %v1300 = vpop.f32.mrf.mxu0
        %v1301 = vpop.f32.mrf.mxu0
        %v1302 = vadd.f32 0.0, %v1301
        %v1303 = vpop.f32.mrf.mxu0
        %1304 = vmatprep.mubr.bf16.mxu0 %v964
        %1305 = vmatmul.mubr.bf16.gmra.mxu0 %v963
        %v1306 = vpop.f32.mrf.mxu0
        %v1307 = vadd.f32 0.0, %v1306
        %v1308 = vpop.f32.mrf.mxu0
        %v1309 = vpop.f32.mrf.mxu0
        %v1310 = vadd.f32 0.0, %v1309
        %v1311 = vpop.f32.mrf.mxu0
        %1312 = vmatprep.mubr.bf16.mxu0 %v965
        %1313 = vmatmul.mubr.bf16.gmra.mxu0 %v964
        %v1314 = vpop.f32.mrf.mxu0
        %v1315 = vadd.f32 0.0, %v1314
        %v1316 = vpop.f32.mrf.mxu0
        %v1317 = vpop.f32.mrf.mxu0
        %v1318 = vadd.f32 0.0, %v1317
        %v1319 = vpop.f32.mrf.mxu0
        %1320 = vmatprep.mubr.bf16.mxu0 %v966
        %1321 = vmatmul.mubr.bf16.gmra.mxu0 %v965
        %v1322 = vpop.f32.mrf.mxu0
        %v1323 = vadd.f32 0.0, %v1322
        %v1324 = vpop.f32.mrf.mxu0
        %v1325 = vpop.f32.mrf.mxu0
        %v1326 = vadd.f32 0.0, %v1325
        %v1327 = vpop.f32.mrf.mxu0
        %1328 = vmatprep.mubr.bf16.mxu0 %v967
        %1329 = vmatmul.mubr.bf16.gmra.mxu0 %v966
        %v1330 = vpop.f32.mrf.mxu0
        %v1331 = vadd.f32 0.0, %v1330
        %v1332 = vpop.f32.mrf.mxu0
        %v1333 = vpop.f32.mrf.mxu0
        %v1334 = vadd.f32 0.0, %v1333
        %v1335 = vpop.f32.mrf.mxu0
        %1336 = vmatprep.mubr.bf16.mxu0 %v968
        %1337 = vmatmul.mubr.bf16.gmra.mxu0 %v967
        %v1338 = vpop.f32.mrf.mxu0
        %v1339 = vadd.f32 0.0, %v1338
        %v1340 = vpop.f32.mrf.mxu0
        %v1341 = vpop.f32.mrf.mxu0
        %v1342 = vadd.f32 0.0, %v1341
        %v1343 = vpop.f32.mrf.mxu0
        %1344 = vmatprep.mubr.bf16.mxu0 %v969
        %1345 = vmatmul.mubr.bf16.gmra.mxu0 %v968
        %v1346 = vpop.f32.mrf.mxu0
        %v1347 = vadd.f32 0.0, %v1346
        %v1348 = vpop.f32.mrf.mxu0
        %v1349 = vpop.f32.mrf.mxu0
        %v1350 = vadd.f32 0.0, %v1349
        %v1351 = vpop.f32.mrf.mxu0
        %1352 = vmatprep.mubr.bf16.mxu0 %v970
        %1353 = vmatmul.mubr.bf16.gmra.mxu0 %v969
        %v1354 = vpop.f32.mrf.mxu0
        %v1355 = vadd.f32 0.0, %v1354
        %v1356 = vpop.f32.mrf.mxu0
        %v1357 = vpop.f32.mrf.mxu0
        %v1358 = vadd.f32 0.0, %v1357
        %v1359 = vpop.f32.mrf.mxu0
        %1360 = vmatprep.mubr.bf16.mxu0 %v971
        %1361 = vmatmul.mubr.bf16.gmra.mxu0 %v970
        %v1362 = vpop.f32.mrf.mxu0
        %v1363 = vadd.f32 0.0, %v1362
        %v1364 = vpop.f32.mrf.mxu0
        %v1365 = vpop.f32.mrf.mxu0
        %v1366 = vadd.f32 0.0, %v1365
        %v1367 = vpop.f32.mrf.mxu0
        %1368 = vmatprep.mubr.bf16.mxu0 %v972
        %1369 = vmatmul.mubr.bf16.gmra.mxu0 %v971
        %v1370 = vpop.f32.mrf.mxu0
        %v1371 = vadd.f32 0.0, %v1370
        %v1372 = vpop.f32.mrf.mxu0
        %v1373 = vpop.f32.mrf.mxu0
        %v1374 = vadd.f32 0.0, %v1373
        %v1375 = vpop.f32.mrf.mxu0
        %1376 = vmatprep.mubr.bf16.mxu0 %v973
        %1377 = vmatmul.mubr.bf16.gmra.mxu0 %v972
        %v1378 = vpop.f32.mrf.mxu0
        %v1379 = vadd.f32 0.0, %v1378
        %v1380 = vpop.f32.mrf.mxu0
        %v1381 = vpop.f32.mrf.mxu0
        %v1382 = vadd.f32 0.0, %v1381
        %v1383 = vpop.f32.mrf.mxu0
        %1384 = vmatprep.mubr.bf16.mxu0 %v974
        %1385 = vmatmul.mubr.bf16.gmra.mxu0 %v973
        %v1386 = vpop.f32.mrf.mxu0
        %v1387 = vadd.f32 0.0, %v1386
        %v1388 = vpop.f32.mrf.mxu0
        %v1389 = vpop.f32.mrf.mxu0
        %v1390 = vadd.f32 0.0, %v1389
        %v1391 = vpop.f32.mrf.mxu0
        %1392 = vdwg.mxu0
        %1393 = vmatprep.subr.bf16.mxu0 0
        %1394 = vmatpush1.bf16.msra.mxu0 %v1207
        %1395 = vmatprep.subr.bf16.mxu0 0
        %1396 = vmatpush1.bf16.msra.mxu0 %v1206
        %1397 = vmatprep.subr.bf16.mxu0 0
        %1398 = vmatpush1.bf16.msra.mxu0 %v1205
        %1399 = vmatprep.subr.bf16.mxu0 0
        %1400 = vmatpush1.bf16.msra.mxu0 %v1204
        %1401 = vmatprep.subr.bf16.mxu0 0
        %1402 = vmatpush1.bf16.msra.mxu0 %v1203
        %1403 = vmatprep.subr.bf16.mxu0 0
        %1404 = vmatpush1.bf16.msra.mxu0 %v1202
        %1405 = vmatprep.subr.bf16.mxu0 0
        %1406 = vmatpush1.bf16.msra.mxu0 %v1201
        %1407 = vmatprep.subr.bf16.mxu0 0
        %1408 = vmatpush1.bf16.msra.mxu0 %v1200
        %1409 = vmatprep.subr.bf16.mxu0 0
        %1410 = vmatpush2.bf16.msra.mxu0 0
        %1411 = vmatprep.subr.bf16.mxu0 0
        %1412 = vmatpush2.bf16.msra.mxu0 0
        %1413 = vmatprep.subr.bf16.mxu0 0
        %1414 = vmatpush2.bf16.msra.mxu0 0
        %1415 = vmatprep.subr.bf16.mxu0 0
        %1416 = vmatpush2.bf16.msra.mxu0 0
        %1417 = vmatprep.subr.bf16.mxu0 0
        %1418 = vmatpush2.bf16.msra.mxu0 0
        %1419 = vmatprep.subr.bf16.mxu0 0
        %1420 = vmatpush2.bf16.msra.mxu0 0
        %1421 = vmatprep.subr.bf16.mxu0 0
        %1422 = vmatpush2.bf16.msra.mxu0 0
        %1423 = vmatprep.subr.bf16.mxu0 0
        %1424 = vmatpush2.bf16.msra.mxu0 0
        %1425 = vmatprep.mubr.bf16.mxu0 0
        %1426 = vmatmul.mubr.bf16.gmra.mxu0 %v960
        %v1427 = vpop.f32.mrf.mxu0
        %v1428 = vadd.f32 %v1267, %v1427
        %v1429 = vpop.f32.mrf.mxu0
        %v1430 = vpop.f32.mrf.mxu0
        %v1431 = vadd.f32 %v1270, %v1430
        %v1432 = vpop.f32.mrf.mxu0
        %1433 = vmatprep.mubr.bf16.mxu0 0
        %1434 = vmatmul.mubr.bf16.gmra.mxu0 %v961
        %v1435 = vpop.f32.mrf.mxu0
        %v1436 = vadd.f32 %v1275, %v1435
        %v1437 = vpop.f32.mrf.mxu0
        %v1438 = vpop.f32.mrf.mxu0
        %v1439 = vadd.f32 %v1278, %v1438
        %v1440 = vpop.f32.mrf.mxu0
        %1441 = vmatprep.mubr.bf16.mxu0 0
        %1442 = vmatmul.mubr.bf16.gmra.mxu0 %v962
        %v1443 = vpop.f32.mrf.mxu0
        %v1444 = vadd.f32 %v1283, %v1443
        %v1445 = vpop.f32.mrf.mxu0
        %v1446 = vpop.f32.mrf.mxu0
        %v1447 = vadd.f32 %v1286, %v1446
        %v1448 = vpop.f32.mrf.mxu0
        %1449 = vmatprep.mubr.bf16.mxu0 0
        %1450 = vmatmul.mubr.bf16.gmra.mxu0 %v963
        %v1451 = vpop.f32.mrf.mxu0
        %v1452 = vadd.f32 %v1291, %v1451
        %v1453 = vpop.f32.mrf.mxu0
        %v1454 = vpop.f32.mrf.mxu0
        %v1455 = vadd.f32 %v1294, %v1454
        %v1456 = vpop.f32.mrf.mxu0
        %1457 = vmatprep.mubr.bf16.mxu0 0
        %1458 = vmatmul.mubr.bf16.gmra.mxu0 %v964
        %v1459 = vpop.f32.mrf.mxu0
        %v1460 = vadd.f32 %v1299, %v1459
        %v1461 = vpop.f32.mrf.mxu0
        %v1462 = vpop.f32.mrf.mxu0
        %v1463 = vadd.f32 %v1302, %v1462
        %v1464 = vpop.f32.mrf.mxu0
        %1465 = vmatprep.mubr.bf16.mxu0 0
        %1466 = vmatmul.mubr.bf16.gmra.mxu0 %v965
        %v1467 = vpop.f32.mrf.mxu0
        %v1468 = vadd.f32 %v1307, %v1467
        %v1469 = vpop.f32.mrf.mxu0
        %v1470 = vpop.f32.mrf.mxu0
        %v1471 = vadd.f32 %v1310, %v1470
        %v1472 = vpop.f32.mrf.mxu0
        %1473 = vmatprep.mubr.bf16.mxu0 0
        %1474 = vmatmul.mubr.bf16.gmra.mxu0 %v966
        %v1475 = vpop.f32.mrf.mxu0
        %v1476 = vadd.f32 %v1315, %v1475
        %v1477 = vpop.f32.mrf.mxu0
        %v1478 = vpop.f32.mrf.mxu0
        %v1479 = vadd.f32 %v1318, %v1478
        %v1480 = vpop.f32.mrf.mxu0
        %1481 = vmatprep.mubr.bf16.mxu0 0
        %1482 = vmatmul.mubr.bf16.gmra.mxu0 %v967
        %v1483 = vpop.f32.mrf.mxu0
        %v1484 = vadd.f32 %v1323, %v1483
        %v1485 = vpop.f32.mrf.mxu0
        %v1486 = vpop.f32.mrf.mxu0
        %v1487 = vadd.f32 %v1326, %v1486
        %v1488 = vpop.f32.mrf.mxu0
        %1489 = vmatprep.mubr.bf16.mxu0 0
        %1490 = vmatmul.mubr.bf16.gmra.mxu0 %v968
        %v1491 = vpop.f32.mrf.mxu0
        %v1492 = vadd.f32 %v1331, %v1491
        %v1493 = vpop.f32.mrf.mxu0
        %v1494 = vpop.f32.mrf.mxu0
        %v1495 = vadd.f32 %v1334, %v1494
        %v1496 = vpop.f32.mrf.mxu0
        %1497 = vmatprep.mubr.bf16.mxu0 0
        %1498 = vmatmul.mubr.bf16.gmra.mxu0 %v969
        %v1499 = vpop.f32.mrf.mxu0
        %v1500 = vadd.f32 %v1339, %v1499
        %v1501 = vpop.f32.mrf.mxu0
        %v1502 = vpop.f32.mrf.mxu0
        %v1503 = vadd.f32 %v1342, %v1502
        %v1504 = vpop.f32.mrf.mxu0
        %1505 = vmatprep.mubr.bf16.mxu0 0
        %1506 = vmatmul.mubr.bf16.gmra.mxu0 %v970
        %v1507 = vpop.f32.mrf.mxu0
        %v1508 = vadd.f32 %v1347, %v1507
        %v1509 = vpop.f32.mrf.mxu0
        %v1510 = vpop.f32.mrf.mxu0
        %v1511 = vadd.f32 %v1350, %v1510
        %v1512 = vpop.f32.mrf.mxu0
        %1513 = vmatprep.mubr.bf16.mxu0 0
        %1514 = vmatmul.mubr.bf16.gmra.mxu0 %v971
        %v1515 = vpop.f32.mrf.mxu0
        %v1516 = vadd.f32 %v1355, %v1515
        %v1517 = vpop.f32.mrf.mxu0
        %v1518 = vpop.f32.mrf.mxu0
        %v1519 = vadd.f32 %v1358, %v1518
        %v1520 = vpop.f32.mrf.mxu0
        %1521 = vmatprep.mubr.bf16.mxu0 0
        %1522 = vmatmul.mubr.bf16.gmra.mxu0 %v972
        %v1523 = vpop.f32.mrf.mxu0
        %v1524 = vadd.f32 %v1363, %v1523
        %v1525 = vpop.f32.mrf.mxu0
        %v1526 = vpop.f32.mrf.mxu0
        %v1527 = vadd.f32 %v1366, %v1526
        %v1528 = vpop.f32.mrf.mxu0
        %1529 = vmatprep.mubr.bf16.mxu0 0
        %1530 = vmatmul.mubr.bf16.gmra.mxu0 %v973
        %v1531 = vpop.f32.mrf.mxu0
        %v1532 = vadd.f32 %v1371, %v1531
        %v1533 = vpop.f32.mrf.mxu0
        %v1534 = vpop.f32.mrf.mxu0
        %v1535 = vadd.f32 %v1374, %v1534
        %v1536 = vpop.f32.mrf.mxu0
        %1537 = vmatprep.mubr.bf16.mxu0 0
        %1538 = vmatmul.mubr.bf16.gmra.mxu0 %v974
        %v1539 = vpop.f32.mrf.mxu0
        %v1540 = vadd.f32 %v1379, %v1539
        %v1541 = vpop.f32.mrf.mxu0
        %v1542 = vpop.f32.mrf.mxu0
        %v1543 = vadd.f32 %v1382, %v1542
        %v1544 = vpop.f32.mrf.mxu0
        %1545 = vmatprep.mubr.bf16.mxu0 0
        %1546 = vmatmul.mubr.bf16.gmra.mxu0 0
        %v1547 = vpop.f32.mrf.mxu0
        %v1548 = vadd.f32 %v1387, %v1547
        %v1549 = vpop.f32.mrf.mxu0
        %v1550 = vpop.f32.mrf.mxu0
        %v1551 = vadd.f32 %v1390, %v1550
        %v1552 = vpop.f32.mrf.mxu0
        %1553 = vdwg.mxu0
        %v1602 = vunpack.c.l.b16 %v991
        %v1603 = vunpack.c.l.b16 %v992
        %v1604 = vunpack.c.l.b16 %v993
        %v1605 = vunpack.c.l.b16 %v994
        %v1606 = vunpack.c.l.b16 %v995
        %v1607 = vunpack.c.l.b16 %v996
        %v1608 = vunpack.c.l.b16 %v997
        %v1609 = vunpack.c.l.b16 %v998
        %v1610 = vunpack.c.l.b16 %v999
        %v1611 = vunpack.c.l.b16 %v1000
        %v1612 = vunpack.c.l.b16 %v1001
        %v1613 = vunpack.c.l.b16 %v1002
        %v1614 = vunpack.c.l.b16 %v1003
        %v1615 = vunpack.c.l.b16 %v1004
        %v1616 = vunpack.c.l.b16 %v1005
        %v1617 = vunpack.c.l.b16 %v1006
        %v1618 = vunpack.c.l.b16 %v1007
        %v1619 = vunpack.c.l.b16 %v1008
        %v1620 = vunpack.c.l.b16 %v1009
        %v1621 = vunpack.c.l.b16 %v1010
        %v1622 = vunpack.c.l.b16 %v1011
        %v1623 = vunpack.c.l.b16 %v1012
        %v1624 = vunpack.c.l.b16 %v1013
        %v1625 = vunpack.c.l.b16 %v1014
        %v1626 = vunpack.c.l.b16 %v1015
        %v1627 = vunpack.c.l.b16 %v1016
        %v1628 = vunpack.c.l.b16 %v1017
        %v1629 = vunpack.c.l.b16 %v1018
        %v1630 = vunpack.c.l.b16 %v1019
        %v1631 = vunpack.c.l.b16 %v1020
        %v1632 = vunpack.c.l.b16 %v1021
        %v1633 = vunpack.c.l.b16 %v1022
        %v1634 = vunpack.c.l.b16 %v1023
        %v1635 = vunpack.c.l.b16 %v1024
        %v1636 = vunpack.c.l.b16 %v1025
        %v1637 = vunpack.c.l.b16 %v1026
        %v1638 = vunpack.c.l.b16 %v1027
        %v1639 = vunpack.c.l.b16 %v1028
        %v1640 = vunpack.c.l.b16 %v1029
        %v1641 = vunpack.c.l.b16 %v1030
        %v1642 = vunpack.c.l.b16 %v1031
        %v1643 = vunpack.c.l.b16 %v1032
        %v1644 = vunpack.c.l.b16 %v1033
        %v1645 = vunpack.c.l.b16 %v1034
        %v1646 = vunpack.c.l.b16 %v1035
        %v1647 = vunpack.c.l.b16 %v1036
        %v1648 = vunpack.c.l.b16 %v1037
        %v1649 = vunpack.c.l.b16 %v1038
        %v1650 = vpack.c.b16 %v1603, %v1602
        %v1651 = vpack.c.b16 %v1605, %v1604
        %v1652 = vpack.c.b16 %v1607, %v1606
        %v1653 = vpack.c.b16 %v1609, %v1608
        %v1654 = vpack.c.b16 %v1611, %v1610
        %v1655 = vpack.c.b16 %v1613, %v1612
        %v1656 = vpack.c.b16 %v1615, %v1614
        %v1657 = vpack.c.b16 %v1617, %v1616
        %v1658 = vpack.c.b16 %v1619, %v1618
        %v1659 = vpack.c.b16 %v1621, %v1620
        %v1660 = vpack.c.b16 %v1623, %v1622
        %v1661 = vpack.c.b16 %v1625, %v1624
        %v1662 = vpack.c.b16 %v1627, %v1626
        %v1663 = vpack.c.b16 %v1629, %v1628
        %v1664 = vpack.c.b16 %v1631, %v1630
        %v1665 = vpack.c.b16 %v1633, %v1632
        %v1666 = vpack.c.b16 %v1635, %v1634
        %v1667 = vpack.c.b16 %v1637, %v1636
        %v1668 = vpack.c.b16 %v1639, %v1638
        %v1669 = vpack.c.b16 %v1641, %v1640
        %v1670 = vpack.c.b16 %v1643, %v1642
        %v1671 = vpack.c.b16 %v1645, %v1644
        %v1672 = vpack.c.b16 %v1647, %v1646
        %v1673 = vpack.c.b16 %v1649, %v1648
        %1698 = vmatprep.subr.bf16.mxu0 0
        %1699 = vmatpush1.bf16.msra.mxu0 %v1657
        %1700 = vmatprep.subr.bf16.mxu0 0
        %1701 = vmatpush1.bf16.msra.mxu0 %v1656
        %1702 = vmatprep.subr.bf16.mxu0 0
        %1703 = vmatpush1.bf16.msra.mxu0 %v1655
        %1704 = vmatprep.subr.bf16.mxu0 0
        %1705 = vmatpush1.bf16.msra.mxu0 %v1654
        %1706 = vmatprep.subr.bf16.mxu0 0
        %1707 = vmatpush1.bf16.msra.mxu0 %v1653
        %1708 = vmatprep.subr.bf16.mxu0 0
        %1709 = vmatpush1.bf16.msra.mxu0 %v1652
        %1710 = vmatprep.subr.bf16.mxu0 0
        %1711 = vmatpush1.bf16.msra.mxu0 %v1651
        %1712 = vmatprep.subr.bf16.mxu0 0
        %1713 = vmatpush1.bf16.msra.mxu0 %v1650
        %1714 = vmatprep.subr.bf16.mxu0 0
        %1715 = vmatpush2.bf16.msra.mxu0 %v1665
        %1716 = vmatprep.subr.bf16.mxu0 0
        %1717 = vmatpush2.bf16.msra.mxu0 %v1664
        %1718 = vmatprep.subr.bf16.mxu0 0
        %1719 = vmatpush2.bf16.msra.mxu0 %v1663
        %1720 = vmatprep.subr.bf16.mxu0 0
        %1721 = vmatpush2.bf16.msra.mxu0 %v1662
        %1722 = vmatprep.subr.bf16.mxu0 0
        %1723 = vmatpush2.bf16.msra.mxu0 %v1661
        %1724 = vmatprep.subr.bf16.mxu0 0
        %1725 = vmatpush2.bf16.msra.mxu0 %v1660
        %1726 = vmatprep.subr.bf16.mxu0 0
        %1727 = vmatpush2.bf16.msra.mxu0 %v1659
        %1728 = vmatprep.subr.bf16.mxu0 0
        %1729 = vmatpush2.bf16.msra.mxu0 %v1658
        %1730 = vmatprep.mubr.bf16.mxu0 %v943
        %1731 = vmatmul.mubr.bf16.gmra.mxu0 0
        %v1732 = vpop.f32.mrf.mxu0
        %v1733 = vadd.f32 %v1428, %v1732
        %v1734 = vpop.f32.mrf.mxu0
        %v1735 = vpop.f32.mrf.mxu0
        %v1736 = vadd.f32 %v1431, %v1735
        %v1737 = vpop.f32.mrf.mxu0
        %1738 = vmatprep.mubr.bf16.mxu0 %v944
        %1739 = vmatmul.mubr.bf16.gmra.mxu0 %v943
        %v1740 = vpop.f32.mrf.mxu0
        %v1741 = vadd.f32 %v1436, %v1740
        %v1742 = vpop.f32.mrf.mxu0
        %v1743 = vpop.f32.mrf.mxu0
        %v1744 = vadd.f32 %v1439, %v1743
        %v1745 = vpop.f32.mrf.mxu0
        %1746 = vmatprep.mubr.bf16.mxu0 %v945
        %1747 = vmatmul.mubr.bf16.gmra.mxu0 %v944
        %v1748 = vpop.f32.mrf.mxu0
        %v1749 = vadd.f32 %v1444, %v1748
        %v1750 = vpop.f32.mrf.mxu0
        %v1751 = vpop.f32.mrf.mxu0
        %v1752 = vadd.f32 %v1447, %v1751
        %v1753 = vpop.f32.mrf.mxu0
        %1754 = vmatprep.mubr.bf16.mxu0 %v946
        %1755 = vmatmul.mubr.bf16.gmra.mxu0 %v945
        %v1756 = vpop.f32.mrf.mxu0
        %v1757 = vadd.f32 %v1452, %v1756
        %v1758 = vpop.f32.mrf.mxu0
        %v1759 = vpop.f32.mrf.mxu0
        %v1760 = vadd.f32 %v1455, %v1759
        %v1761 = vpop.f32.mrf.mxu0
        %1762 = vmatprep.mubr.bf16.mxu0 %v947
        %1763 = vmatmul.mubr.bf16.gmra.mxu0 %v946
        %v1764 = vpop.f32.mrf.mxu0
        %v1765 = vadd.f32 %v1460, %v1764
        %v1766 = vpop.f32.mrf.mxu0
        %v1767 = vpop.f32.mrf.mxu0
        %v1768 = vadd.f32 %v1463, %v1767
        %v1769 = vpop.f32.mrf.mxu0
        %1770 = vmatprep.mubr.bf16.mxu0 %v948
        %1771 = vmatmul.mubr.bf16.gmra.mxu0 %v947
        %v1772 = vpop.f32.mrf.mxu0
        %v1773 = vadd.f32 %v1468, %v1772
        %v1774 = vpop.f32.mrf.mxu0
        %v1775 = vpop.f32.mrf.mxu0
        %v1776 = vadd.f32 %v1471, %v1775
        %v1777 = vpop.f32.mrf.mxu0
        %1778 = vmatprep.mubr.bf16.mxu0 %v949
        %1779 = vmatmul.mubr.bf16.gmra.mxu0 %v948
        %v1780 = vpop.f32.mrf.mxu0
        %v1781 = vadd.f32 %v1476, %v1780
        %v1782 = vpop.f32.mrf.mxu0
        %v1783 = vpop.f32.mrf.mxu0
        %v1784 = vadd.f32 %v1479, %v1783
        %v1785 = vpop.f32.mrf.mxu0
        %1786 = vmatprep.mubr.bf16.mxu0 %v950
        %1787 = vmatmul.mubr.bf16.gmra.mxu0 %v949
        %v1788 = vpop.f32.mrf.mxu0
        %v1789 = vadd.f32 %v1484, %v1788
        %v1790 = vpop.f32.mrf.mxu0
        %v1791 = vpop.f32.mrf.mxu0
        %v1792 = vadd.f32 %v1487, %v1791
        %v1793 = vpop.f32.mrf.mxu0
        %1794 = vmatprep.mubr.bf16.mxu0 %v951
        %1795 = vmatmul.mubr.bf16.gmra.mxu0 %v950
        %v1796 = vpop.f32.mrf.mxu0
        %v1797 = vadd.f32 %v1492, %v1796
        %v1798 = vpop.f32.mrf.mxu0
        %v1799 = vpop.f32.mrf.mxu0
        %v1800 = vadd.f32 %v1495, %v1799
        %v1801 = vpop.f32.mrf.mxu0
        %1802 = vmatprep.mubr.bf16.mxu0 %v952
        %1803 = vmatmul.mubr.bf16.gmra.mxu0 %v951
        %v1804 = vpop.f32.mrf.mxu0
        %v1805 = vadd.f32 %v1500, %v1804
        %v1806 = vpop.f32.mrf.mxu0
        %v1807 = vpop.f32.mrf.mxu0
        %v1808 = vadd.f32 %v1503, %v1807
        %v1809 = vpop.f32.mrf.mxu0
        %1810 = vmatprep.mubr.bf16.mxu0 %v953
        %1811 = vmatmul.mubr.bf16.gmra.mxu0 %v952
        %v1812 = vpop.f32.mrf.mxu0
        %v1813 = vadd.f32 %v1508, %v1812
        %v1814 = vpop.f32.mrf.mxu0
        %v1815 = vpop.f32.mrf.mxu0
        %v1816 = vadd.f32 %v1511, %v1815
        %v1817 = vpop.f32.mrf.mxu0
        %1818 = vmatprep.mubr.bf16.mxu0 %v954
        %1819 = vmatmul.mubr.bf16.gmra.mxu0 %v953
        %v1820 = vpop.f32.mrf.mxu0
        %v1821 = vadd.f32 %v1516, %v1820
        %v1822 = vpop.f32.mrf.mxu0
        %v1823 = vpop.f32.mrf.mxu0
        %v1824 = vadd.f32 %v1519, %v1823
        %v1825 = vpop.f32.mrf.mxu0
        %1826 = vmatprep.mubr.bf16.mxu0 %v955
        %1827 = vmatmul.mubr.bf16.gmra.mxu0 %v954
        %v1828 = vpop.f32.mrf.mxu0
        %v1829 = vadd.f32 %v1524, %v1828
        %v1830 = vpop.f32.mrf.mxu0
        %v1831 = vpop.f32.mrf.mxu0
        %v1832 = vadd.f32 %v1527, %v1831
        %v1833 = vpop.f32.mrf.mxu0
        %1834 = vmatprep.mubr.bf16.mxu0 %v956
        %1835 = vmatmul.mubr.bf16.gmra.mxu0 %v955
        %v1836 = vpop.f32.mrf.mxu0
        %v1837 = vadd.f32 %v1532, %v1836
        %v1838 = vpop.f32.mrf.mxu0
        %v1839 = vpop.f32.mrf.mxu0
        %v1840 = vadd.f32 %v1535, %v1839
        %v1841 = vpop.f32.mrf.mxu0
        %1842 = vmatprep.mubr.bf16.mxu0 %v957
        %1843 = vmatmul.mubr.bf16.gmra.mxu0 %v956
        %v1844 = vpop.f32.mrf.mxu0
        %v1845 = vadd.f32 %v1540, %v1844
        %v1846 = vpop.f32.mrf.mxu0
        %v1847 = vpop.f32.mrf.mxu0
        %v1848 = vadd.f32 %v1543, %v1847
        %v1849 = vpop.f32.mrf.mxu0
        %1850 = vmatprep.mubr.bf16.mxu0 %v958
        %1851 = vmatmul.mubr.bf16.gmra.mxu0 %v957
        %v1852 = vpop.f32.mrf.mxu0
        %v1853 = vadd.f32 %v1548, %v1852
        %v1854 = vpop.f32.mrf.mxu0
        %v1855 = vpop.f32.mrf.mxu0
        %v1856 = vadd.f32 %v1551, %v1855
        %v1857 = vpop.f32.mrf.mxu0
        %1858 = vdwg.mxu0
        %1859 = vmatprep.subr.bf16.mxu0 0
        %1860 = vmatpush1.bf16.msra.mxu0 %v1673
        %1861 = vmatprep.subr.bf16.mxu0 0
        %1862 = vmatpush1.bf16.msra.mxu0 %v1672
        %1863 = vmatprep.subr.bf16.mxu0 0
        %1864 = vmatpush1.bf16.msra.mxu0 %v1671
        %1865 = vmatprep.subr.bf16.mxu0 0
        %1866 = vmatpush1.bf16.msra.mxu0 %v1670
        %1867 = vmatprep.subr.bf16.mxu0 0
        %1868 = vmatpush1.bf16.msra.mxu0 %v1669
        %1869 = vmatprep.subr.bf16.mxu0 0
        %1870 = vmatpush1.bf16.msra.mxu0 %v1668
        %1871 = vmatprep.subr.bf16.mxu0 0
        %1872 = vmatpush1.bf16.msra.mxu0 %v1667
        %1873 = vmatprep.subr.bf16.mxu0 0
        %1874 = vmatpush1.bf16.msra.mxu0 %v1666
        %1875 = vmatprep.subr.bf16.mxu0 0
        %1876 = vmatpush2.bf16.msra.mxu0 0
        %1877 = vmatprep.subr.bf16.mxu0 0
        %1878 = vmatpush2.bf16.msra.mxu0 0
        %1879 = vmatprep.subr.bf16.mxu0 0
        %1880 = vmatpush2.bf16.msra.mxu0 0
        %1881 = vmatprep.subr.bf16.mxu0 0
        %1882 = vmatpush2.bf16.msra.mxu0 0
        %1883 = vmatprep.subr.bf16.mxu0 0
        %1884 = vmatpush2.bf16.msra.mxu0 0
        %1885 = vmatprep.subr.bf16.mxu0 0
        %1886 = vmatpush2.bf16.msra.mxu0 0
        %1887 = vmatprep.subr.bf16.mxu0 0
        %1888 = vmatpush2.bf16.msra.mxu0 0
        %1889 = vmatprep.subr.bf16.mxu0 0
        %1890 = vmatpush2.bf16.msra.mxu0 0
        %1891 = vmatprep.mubr.bf16.mxu0 0
        %1892 = vmatmul.mubr.bf16.gmra.mxu0 %v944
        %v1893 = vpop.f32.mrf.mxu0
        %v1894 = vadd.f32 %v1733, %v1893
        %v1895 = vpop.f32.mrf.mxu0
        %v1896 = vpop.f32.mrf.mxu0
        %v1897 = vadd.f32 %v1736, %v1896
        %v1898 = vpop.f32.mrf.mxu0
        %1899 = vmatprep.mubr.bf16.mxu0 0
        %1900 = vmatmul.mubr.bf16.gmra.mxu0 %v945
        %v1901 = vpop.f32.mrf.mxu0
        %v1902 = vadd.f32 %v1741, %v1901
        %v1903 = vpop.f32.mrf.mxu0
        %v1904 = vpop.f32.mrf.mxu0
        %v1905 = vadd.f32 %v1744, %v1904
        %v1906 = vpop.f32.mrf.mxu0
        %1907 = vmatprep.mubr.bf16.mxu0 0
        %1908 = vmatmul.mubr.bf16.gmra.mxu0 %v946
        %v1909 = vpop.f32.mrf.mxu0
        %v1910 = vadd.f32 %v1749, %v1909
        %v1911 = vpop.f32.mrf.mxu0
        %v1912 = vpop.f32.mrf.mxu0
        %v1913 = vadd.f32 %v1752, %v1912
        %v1914 = vpop.f32.mrf.mxu0
        %1915 = vmatprep.mubr.bf16.mxu0 0
        %1916 = vmatmul.mubr.bf16.gmra.mxu0 %v947
        %v1917 = vpop.f32.mrf.mxu0
        %v1918 = vadd.f32 %v1757, %v1917
        %v1919 = vpop.f32.mrf.mxu0
        %v1920 = vpop.f32.mrf.mxu0
        %v1921 = vadd.f32 %v1760, %v1920
        %v1922 = vpop.f32.mrf.mxu0
        %1923 = vmatprep.mubr.bf16.mxu0 0
        %1924 = vmatmul.mubr.bf16.gmra.mxu0 %v948
        %v1925 = vpop.f32.mrf.mxu0
        %v1926 = vadd.f32 %v1765, %v1925
        %v1927 = vpop.f32.mrf.mxu0
        %v1928 = vpop.f32.mrf.mxu0
        %v1929 = vadd.f32 %v1768, %v1928
        %v1930 = vpop.f32.mrf.mxu0
        %1931 = vmatprep.mubr.bf16.mxu0 0
        %1932 = vmatmul.mubr.bf16.gmra.mxu0 %v949
        %v1933 = vpop.f32.mrf.mxu0
        %v1934 = vadd.f32 %v1773, %v1933
        %v1935 = vpop.f32.mrf.mxu0
        %v1936 = vpop.f32.mrf.mxu0
        %v1937 = vadd.f32 %v1776, %v1936
        %v1938 = vpop.f32.mrf.mxu0
        %1939 = vmatprep.mubr.bf16.mxu0 0
        %1940 = vmatmul.mubr.bf16.gmra.mxu0 %v950
        %v1941 = vpop.f32.mrf.mxu0
        %v1942 = vadd.f32 %v1781, %v1941
        %v1943 = vpop.f32.mrf.mxu0
        %v1944 = vpop.f32.mrf.mxu0
        %v1945 = vadd.f32 %v1784, %v1944
        %v1946 = vpop.f32.mrf.mxu0
        %1947 = vmatprep.mubr.bf16.mxu0 0
        %1948 = vmatmul.mubr.bf16.gmra.mxu0 %v951
        %v1949 = vpop.f32.mrf.mxu0
        %v1950 = vadd.f32 %v1789, %v1949
        %v1951 = vpop.f32.mrf.mxu0
        %v1952 = vpop.f32.mrf.mxu0
        %v1953 = vadd.f32 %v1792, %v1952
        %v1954 = vpop.f32.mrf.mxu0
        %1955 = vmatprep.mubr.bf16.mxu0 0
        %1956 = vmatmul.mubr.bf16.gmra.mxu0 %v952
        %v1957 = vpop.f32.mrf.mxu0
        %v1958 = vadd.f32 %v1797, %v1957
        %v1959 = vpop.f32.mrf.mxu0
        %v1960 = vpop.f32.mrf.mxu0
        %v1961 = vadd.f32 %v1800, %v1960
        %v1962 = vpop.f32.mrf.mxu0
        %1963 = vmatprep.mubr.bf16.mxu0 0
        %1964 = vmatmul.mubr.bf16.gmra.mxu0 %v953
        %v1965 = vpop.f32.mrf.mxu0
        %v1966 = vadd.f32 %v1805, %v1965
        %v1967 = vpop.f32.mrf.mxu0
        %v1968 = vpop.f32.mrf.mxu0
        %v1969 = vadd.f32 %v1808, %v1968
        %v1970 = vpop.f32.mrf.mxu0
        %1971 = vmatprep.mubr.bf16.mxu0 0
        %1972 = vmatmul.mubr.bf16.gmra.mxu0 %v954
        %v1973 = vpop.f32.mrf.mxu0
        %v1974 = vadd.f32 %v1813, %v1973
        %v1975 = vpop.f32.mrf.mxu0
        %v1976 = vpop.f32.mrf.mxu0
        %v1977 = vadd.f32 %v1816, %v1976
        %v1978 = vpop.f32.mrf.mxu0
        %1979 = vmatprep.mubr.bf16.mxu0 0
        %1980 = vmatmul.mubr.bf16.gmra.mxu0 %v955
        %v1981 = vpop.f32.mrf.mxu0
        %v1982 = vadd.f32 %v1821, %v1981
        %v1983 = vpop.f32.mrf.mxu0
        %v1984 = vpop.f32.mrf.mxu0
        %v1985 = vadd.f32 %v1824, %v1984
        %v1986 = vpop.f32.mrf.mxu0
        %1987 = vmatprep.mubr.bf16.mxu0 0
        %1988 = vmatmul.mubr.bf16.gmra.mxu0 %v956
        %v1989 = vpop.f32.mrf.mxu0
        %v1990 = vadd.f32 %v1829, %v1989
        %v1991 = vpop.f32.mrf.mxu0
        %v1992 = vpop.f32.mrf.mxu0
        %v1993 = vadd.f32 %v1832, %v1992
        %v1994 = vpop.f32.mrf.mxu0
        %1995 = vmatprep.mubr.bf16.mxu0 0
        %1996 = vmatmul.mubr.bf16.gmra.mxu0 %v957
        %v1997 = vpop.f32.mrf.mxu0
        %v1998 = vadd.f32 %v1837, %v1997
        %v1999 = vpop.f32.mrf.mxu0
        %v2000 = vpop.f32.mrf.mxu0
        %v2001 = vadd.f32 %v1840, %v2000
        %v2002 = vpop.f32.mrf.mxu0
        %2003 = vmatprep.mubr.bf16.mxu0 0
        %2004 = vmatmul.mubr.bf16.gmra.mxu0 %v958
        %v2005 = vpop.f32.mrf.mxu0
        %v2006 = vadd.f32 %v1845, %v2005
        %v2007 = vpop.f32.mrf.mxu0
        %v2008 = vpop.f32.mrf.mxu0
        %v2009 = vadd.f32 %v1848, %v2008
        %v2010 = vpop.f32.mrf.mxu0
        %2011 = vmatprep.mubr.bf16.mxu0 0
        %2012 = vmatmul.mubr.bf16.gmra.mxu0 0
        %v2013 = vpop.f32.mrf.mxu0
        %v2014 = vadd.f32 %v1853, %v2013
        %v2015 = vpop.f32.mrf.mxu0
        %v2016 = vpop.f32.mrf.mxu0
        %v2017 = vadd.f32 %v1856, %v2016
        %v2018 = vpop.f32.mrf.mxu0
        %2019 = vdwg.mxu0
        %s2020 = scalar_lea.vmem [#allocation7], 384
        %v2021 = vld [vmem:[%s2020] sm:$0xf]
        %v2022 = vld [vmem:[%s2020 + $0x4] sm:$0xf]
        %v2023 = vld [vmem:[%s2020 + $0x8] sm:$0xf]
        %v2024 = vld [vmem:[%s2020 + $0xc] sm:$0xf]
        %v2025 = vld [vmem:[%s2020 + $0x10] sm:$0xf]
        %v2026 = vld [vmem:[%s2020 + $0x14] sm:$0xf]
        %v2027 = vld [vmem:[%s2020 + $0x18] sm:$0xf]
        %v2028 = vld [vmem:[%s2020 + $0x1c] sm:$0xf]
        %v2029 = vld [vmem:[%s2020 + $0x20] sm:$0xf]
        %v2030 = vld [vmem:[%s2020 + $0x24] sm:$0xf]
        %v2031 = vld [vmem:[%s2020 + $0x28] sm:$0xf]
        %v2032 = vld [vmem:[%s2020 + $0x2c] sm:$0xf]
        %v2033 = vld [vmem:[%s2020 + $0x30] sm:$0xf]
        %v2034 = vld [vmem:[%s2020 + $0x34] sm:$0xf]
        %v2035 = vld [vmem:[%s2020 + $0x38] sm:$0xf]
        %v2036 = vld [vmem:[%s2020 + $0x3c] sm:$0xf]
        %v2037 = vld [vmem:[%s2020 + $0x40] sm:$0xf]
        %v2038 = vld [vmem:[%s2020 + $0x44] sm:$0xf]
        %v2039 = vld [vmem:[%s2020 + $0x48] sm:$0xf]
        %v2040 = vld [vmem:[%s2020 + $0x4c] sm:$0xf]
        %v2041 = vld [vmem:[%s2020 + $0x50] sm:$0xf]
        %v2042 = vld [vmem:[%s2020 + $0x54] sm:$0xf]
        %v2043 = vld [vmem:[%s2020 + $0x58] sm:$0xf]
        %v2044 = vld [vmem:[%s2020 + $0x5c] sm:$0xf]
        %v2045 = vld [vmem:[%s2020 + $0x60] sm:$0xf]
        %v2046 = vld [vmem:[%s2020 + $0x64] sm:$0xf]
        %v2047 = vld [vmem:[%s2020 + $0x68] sm:$0xf]
        %v2048 = vld [vmem:[%s2020 + $0x6c] sm:$0xf]
        %v2049 = vld [vmem:[%s2020 + $0x70] sm:$0xf]
        %v2050 = vld [vmem:[%s2020 + $0x74] sm:$0xf]
        %v2051 = vld [vmem:[%s2020 + $0x78] sm:$0xf]
        %v2052 = vld [vmem:[%s2020 + $0x7c] sm:$0xf]
        %v2053 = vld [vmem:[%s2020 + $0x80] sm:$0xf]
        %v2054 = vld [vmem:[%s2020 + $0x84] sm:$0xf]
        %v2055 = vld [vmem:[%s2020 + $0x88] sm:$0xf]
        %v2056 = vld [vmem:[%s2020 + $0x8c] sm:$0xf]
        %v2057 = vld [vmem:[%s2020 + $0x90] sm:$0xf]
        %v2058 = vld [vmem:[%s2020 + $0x94] sm:$0xf]
        %v2059 = vld [vmem:[%s2020 + $0x98] sm:$0xf]
        %v2060 = vld [vmem:[%s2020 + $0x9c] sm:$0xf]
        %v2061 = vld [vmem:[%s2020 + $0xa0] sm:$0xf]
        %v2062 = vld [vmem:[%s2020 + $0xa4] sm:$0xf]
        %v2063 = vld [vmem:[%s2020 + $0xa8] sm:$0xf]
        %v2064 = vld [vmem:[%s2020 + $0xac] sm:$0xf]
        %v2065 = vld [vmem:[%s2020 + $0xb0] sm:$0xf]
        %v2066 = vld [vmem:[%s2020 + $0xb4] sm:$0xf]
        %v2067 = vld [vmem:[%s2020 + $0xb8] sm:$0xf]
        %v2068 = vld [vmem:[%s2020 + $0xbc] sm:$0xf]
        %v2117 = vunpack.c.l.b16 %v2021
        %v2118 = vunpack.c.l.b16 %v2022
        %v2119 = vunpack.c.l.b16 %v2023
        %v2120 = vunpack.c.l.b16 %v2024
        %v2121 = vunpack.c.l.b16 %v2025
        %v2122 = vunpack.c.l.b16 %v2026
        %v2123 = vunpack.c.l.b16 %v2027
        %v2124 = vunpack.c.l.b16 %v2028
        %v2125 = vunpack.c.l.b16 %v2029
        %v2126 = vunpack.c.l.b16 %v2030
        %v2127 = vunpack.c.l.b16 %v2031
        %v2128 = vunpack.c.l.b16 %v2032
        %v2129 = vunpack.c.l.b16 %v2033
        %v2130 = vunpack.c.l.b16 %v2034
        %v2131 = vunpack.c.l.b16 %v2035
        %v2132 = vunpack.c.l.b16 %v2036
        %v2133 = vunpack.c.l.b16 %v2037
        %v2134 = vunpack.c.l.b16 %v2038
        %v2135 = vunpack.c.l.b16 %v2039
        %v2136 = vunpack.c.l.b16 %v2040
        %v2137 = vunpack.c.l.b16 %v2041
        %v2138 = vunpack.c.l.b16 %v2042
        %v2139 = vunpack.c.l.b16 %v2043
        %v2140 = vunpack.c.l.b16 %v2044
        %v2141 = vunpack.c.l.b16 %v2045
        %v2142 = vunpack.c.l.b16 %v2046
        %v2143 = vunpack.c.l.b16 %v2047
        %v2144 = vunpack.c.l.b16 %v2048
        %v2145 = vunpack.c.l.b16 %v2049
        %v2146 = vunpack.c.l.b16 %v2050
        %v2147 = vunpack.c.l.b16 %v2051
        %v2148 = vunpack.c.l.b16 %v2052
        %v2149 = vunpack.c.l.b16 %v2053
        %v2150 = vunpack.c.l.b16 %v2054
        %v2151 = vunpack.c.l.b16 %v2055
        %v2152 = vunpack.c.l.b16 %v2056
        %v2153 = vunpack.c.l.b16 %v2057
        %v2154 = vunpack.c.l.b16 %v2058
        %v2155 = vunpack.c.l.b16 %v2059
        %v2156 = vunpack.c.l.b16 %v2060
        %v2157 = vunpack.c.l.b16 %v2061
        %v2158 = vunpack.c.l.b16 %v2062
        %v2159 = vunpack.c.l.b16 %v2063
        %v2160 = vunpack.c.l.b16 %v2064
        %v2161 = vunpack.c.l.b16 %v2065
        %v2162 = vunpack.c.l.b16 %v2066
        %v2163 = vunpack.c.l.b16 %v2067
        %v2164 = vunpack.c.l.b16 %v2068
        %v2165 = vpack.c.b16 %v2118, %v2117
        %v2166 = vpack.c.b16 %v2120, %v2119
        %v2167 = vpack.c.b16 %v2122, %v2121
        %v2168 = vpack.c.b16 %v2124, %v2123
        %v2169 = vpack.c.b16 %v2126, %v2125
        %v2170 = vpack.c.b16 %v2128, %v2127
        %v2171 = vpack.c.b16 %v2130, %v2129
        %v2172 = vpack.c.b16 %v2132, %v2131
        %v2173 = vpack.c.b16 %v2134, %v2133
        %v2174 = vpack.c.b16 %v2136, %v2135
        %v2175 = vpack.c.b16 %v2138, %v2137
        %v2176 = vpack.c.b16 %v2140, %v2139
        %v2177 = vpack.c.b16 %v2142, %v2141
        %v2178 = vpack.c.b16 %v2144, %v2143
        %v2179 = vpack.c.b16 %v2146, %v2145
        %v2180 = vpack.c.b16 %v2148, %v2147
        %v2181 = vpack.c.b16 %v2150, %v2149
        %v2182 = vpack.c.b16 %v2152, %v2151
        %v2183 = vpack.c.b16 %v2154, %v2153
        %v2184 = vpack.c.b16 %v2156, %v2155
        %v2185 = vpack.c.b16 %v2158, %v2157
        %v2186 = vpack.c.b16 %v2160, %v2159
        %v2187 = vpack.c.b16 %v2162, %v2161
        %v2188 = vpack.c.b16 %v2164, %v2163
        %2213 = vmatprep.subr.bf16.mxu0 0
        %2214 = vmatpush1.bf16.msra.mxu0 %v2172
        %2215 = vmatprep.subr.bf16.mxu0 0
        %2216 = vmatpush1.bf16.msra.mxu0 %v2171
        %2217 = vmatprep.subr.bf16.mxu0 0
        %2218 = vmatpush1.bf16.msra.mxu0 %v2170
        %2219 = vmatprep.subr.bf16.mxu0 0
        %2220 = vmatpush1.bf16.msra.mxu0 %v2169
        %2221 = vmatprep.subr.bf16.mxu0 0
        %2222 = vmatpush1.bf16.msra.mxu0 %v2168
        %2223 = vmatprep.subr.bf16.mxu0 0
        %2224 = vmatpush1.bf16.msra.mxu0 %v2167
        %2225 = vmatprep.subr.bf16.mxu0 0
        %2226 = vmatpush1.bf16.msra.mxu0 %v2166
        %2227 = vmatprep.subr.bf16.mxu0 0
        %2228 = vmatpush1.bf16.msra.mxu0 %v2165
        %2229 = vmatprep.subr.bf16.mxu0 0
        %2230 = vmatpush2.bf16.msra.mxu0 %v2180
        %2231 = vmatprep.subr.bf16.mxu0 0
        %2232 = vmatpush2.bf16.msra.mxu0 %v2179
        %2233 = vmatprep.subr.bf16.mxu0 0
        %2234 = vmatpush2.bf16.msra.mxu0 %v2178
        %2235 = vmatprep.subr.bf16.mxu0 0
        %2236 = vmatpush2.bf16.msra.mxu0 %v2177
        %2237 = vmatprep.subr.bf16.mxu0 0
        %2238 = vmatpush2.bf16.msra.mxu0 %v2176
        %2239 = vmatprep.subr.bf16.mxu0 0
        %2240 = vmatpush2.bf16.msra.mxu0 %v2175
        %2241 = vmatprep.subr.bf16.mxu0 0
        %2242 = vmatpush2.bf16.msra.mxu0 %v2174
        %2243 = vmatprep.subr.bf16.mxu0 0
        %2244 = vmatpush2.bf16.msra.mxu0 %v2173
        %2245 = vmatprep.mubr.bf16.mxu0 %v975
        %2246 = vmatmul.mubr.bf16.gmra.mxu0 0
        %v2247 = vpop.f32.mrf.mxu0
        %v2248 = vadd.f32 0.0, %v2247
        %v2249 = vpop.f32.mrf.mxu0
        %v2250 = vpop.f32.mrf.mxu0
        %v2251 = vadd.f32 0.0, %v2250
        %v2252 = vpop.f32.mrf.mxu0
        %2253 = vmatprep.mubr.bf16.mxu0 %v976
        %2254 = vmatmul.mubr.bf16.gmra.mxu0 %v975
        %v2255 = vpop.f32.mrf.mxu0
        %v2256 = vadd.f32 0.0, %v2255
        %v2257 = vpop.f32.mrf.mxu0
        %v2258 = vpop.f32.mrf.mxu0
        %v2259 = vadd.f32 0.0, %v2258
        %v2260 = vpop.f32.mrf.mxu0
        %2261 = vmatprep.mubr.bf16.mxu0 %v977
        %2262 = vmatmul.mubr.bf16.gmra.mxu0 %v976
        %v2263 = vpop.f32.mrf.mxu0
        %v2264 = vadd.f32 0.0, %v2263
        %v2265 = vpop.f32.mrf.mxu0
        %v2266 = vpop.f32.mrf.mxu0
        %v2267 = vadd.f32 0.0, %v2266
        %v2268 = vpop.f32.mrf.mxu0
        %2269 = vmatprep.mubr.bf16.mxu0 %v978
        %2270 = vmatmul.mubr.bf16.gmra.mxu0 %v977
        %v2271 = vpop.f32.mrf.mxu0
        %v2272 = vadd.f32 0.0, %v2271
        %v2273 = vpop.f32.mrf.mxu0
        %v2274 = vpop.f32.mrf.mxu0
        %v2275 = vadd.f32 0.0, %v2274
        %v2276 = vpop.f32.mrf.mxu0
        %2277 = vmatprep.mubr.bf16.mxu0 %v979
        %2278 = vmatmul.mubr.bf16.gmra.mxu0 %v978
        %v2279 = vpop.f32.mrf.mxu0
        %v2280 = vadd.f32 0.0, %v2279
        %v2281 = vpop.f32.mrf.mxu0
        %v2282 = vpop.f32.mrf.mxu0
        %v2283 = vadd.f32 0.0, %v2282
        %v2284 = vpop.f32.mrf.mxu0
        %2285 = vmatprep.mubr.bf16.mxu0 %v980
        %2286 = vmatmul.mubr.bf16.gmra.mxu0 %v979
        %v2287 = vpop.f32.mrf.mxu0
        %v2288 = vadd.f32 0.0, %v2287
        %v2289 = vpop.f32.mrf.mxu0
        %v2290 = vpop.f32.mrf.mxu0
        %v2291 = vadd.f32 0.0, %v2290
        %v2292 = vpop.f32.mrf.mxu0
        %2293 = vmatprep.mubr.bf16.mxu0 %v981
        %2294 = vmatmul.mubr.bf16.gmra.mxu0 %v980
        %v2295 = vpop.f32.mrf.mxu0
        %v2296 = vadd.f32 0.0, %v2295
        %v2297 = vpop.f32.mrf.mxu0
        %v2298 = vpop.f32.mrf.mxu0
        %v2299 = vadd.f32 0.0, %v2298
        %v2300 = vpop.f32.mrf.mxu0
        %2301 = vmatprep.mubr.bf16.mxu0 %v982
        %2302 = vmatmul.mubr.bf16.gmra.mxu0 %v981
        %v2303 = vpop.f32.mrf.mxu0
        %v2304 = vadd.f32 0.0, %v2303
        %v2305 = vpop.f32.mrf.mxu0
        %v2306 = vpop.f32.mrf.mxu0
        %v2307 = vadd.f32 0.0, %v2306
        %v2308 = vpop.f32.mrf.mxu0
        %2309 = vmatprep.mubr.bf16.mxu0 %v983
        %2310 = vmatmul.mubr.bf16.gmra.mxu0 %v982
        %v2311 = vpop.f32.mrf.mxu0
        %v2312 = vadd.f32 0.0, %v2311
        %v2313 = vpop.f32.mrf.mxu0
        %v2314 = vpop.f32.mrf.mxu0
        %v2315 = vadd.f32 0.0, %v2314
        %v2316 = vpop.f32.mrf.mxu0
        %2317 = vmatprep.mubr.bf16.mxu0 %v984
        %2318 = vmatmul.mubr.bf16.gmra.mxu0 %v983
        %v2319 = vpop.f32.mrf.mxu0
        %v2320 = vadd.f32 0.0, %v2319
        %v2321 = vpop.f32.mrf.mxu0
        %v2322 = vpop.f32.mrf.mxu0
        %v2323 = vadd.f32 0.0, %v2322
        %v2324 = vpop.f32.mrf.mxu0
        %2325 = vmatprep.mubr.bf16.mxu0 %v985
        %2326 = vmatmul.mubr.bf16.gmra.mxu0 %v984
        %v2327 = vpop.f32.mrf.mxu0
        %v2328 = vadd.f32 0.0, %v2327
        %v2329 = vpop.f32.mrf.mxu0
        %v2330 = vpop.f32.mrf.mxu0
        %v2331 = vadd.f32 0.0, %v2330
        %v2332 = vpop.f32.mrf.mxu0
        %2333 = vmatprep.mubr.bf16.mxu0 %v986
        %2334 = vmatmul.mubr.bf16.gmra.mxu0 %v985
        %v2335 = vpop.f32.mrf.mxu0
        %v2336 = vadd.f32 0.0, %v2335
        %v2337 = vpop.f32.mrf.mxu0
        %v2338 = vpop.f32.mrf.mxu0
        %v2339 = vadd.f32 0.0, %v2338
        %v2340 = vpop.f32.mrf.mxu0
        %2341 = vmatprep.mubr.bf16.mxu0 %v987
        %2342 = vmatmul.mubr.bf16.gmra.mxu0 %v986
        %v2343 = vpop.f32.mrf.mxu0
        %v2344 = vadd.f32 0.0, %v2343
        %v2345 = vpop.f32.mrf.mxu0
        %v2346 = vpop.f32.mrf.mxu0
        %v2347 = vadd.f32 0.0, %v2346
        %v2348 = vpop.f32.mrf.mxu0
        %2349 = vmatprep.mubr.bf16.mxu0 %v988
        %2350 = vmatmul.mubr.bf16.gmra.mxu0 %v987
        %v2351 = vpop.f32.mrf.mxu0
        %v2352 = vadd.f32 0.0, %v2351
        %v2353 = vpop.f32.mrf.mxu0
        %v2354 = vpop.f32.mrf.mxu0
        %v2355 = vadd.f32 0.0, %v2354
        %v2356 = vpop.f32.mrf.mxu0
        %2357 = vmatprep.mubr.bf16.mxu0 %v989
        %2358 = vmatmul.mubr.bf16.gmra.mxu0 %v988
        %v2359 = vpop.f32.mrf.mxu0
        %v2360 = vadd.f32 0.0, %v2359
        %v2361 = vpop.f32.mrf.mxu0
        %v2362 = vpop.f32.mrf.mxu0
        %v2363 = vadd.f32 0.0, %v2362
        %v2364 = vpop.f32.mrf.mxu0
        %2365 = vmatprep.mubr.bf16.mxu0 %v990
        %2366 = vmatmul.mubr.bf16.gmra.mxu0 %v989
        %v2367 = vpop.f32.mrf.mxu0
        %v2368 = vadd.f32 0.0, %v2367
        %v2369 = vpop.f32.mrf.mxu0
        %v2370 = vpop.f32.mrf.mxu0
        %v2371 = vadd.f32 0.0, %v2370
        %v2372 = vpop.f32.mrf.mxu0
        %2373 = vdwg.mxu0
        %2374 = vmatprep.subr.bf16.mxu0 0
        %2375 = vmatpush1.bf16.msra.mxu0 %v2188
        %2376 = vmatprep.subr.bf16.mxu0 0
        %2377 = vmatpush1.bf16.msra.mxu0 %v2187
        %2378 = vmatprep.subr.bf16.mxu0 0
        %2379 = vmatpush1.bf16.msra.mxu0 %v2186
        %2380 = vmatprep.subr.bf16.mxu0 0
        %2381 = vmatpush1.bf16.msra.mxu0 %v2185
        %2382 = vmatprep.subr.bf16.mxu0 0
        %2383 = vmatpush1.bf16.msra.mxu0 %v2184
        %2384 = vmatprep.subr.bf16.mxu0 0
        %2385 = vmatpush1.bf16.msra.mxu0 %v2183
        %2386 = vmatprep.subr.bf16.mxu0 0
        %2387 = vmatpush1.bf16.msra.mxu0 %v2182
        %2388 = vmatprep.subr.bf16.mxu0 0
        %2389 = vmatpush1.bf16.msra.mxu0 %v2181
        %2390 = vmatprep.subr.bf16.mxu0 0
        %2391 = vmatpush2.bf16.msra.mxu0 0
        %2392 = vmatprep.subr.bf16.mxu0 0
        %2393 = vmatpush2.bf16.msra.mxu0 0
        %2394 = vmatprep.subr.bf16.mxu0 0
        %2395 = vmatpush2.bf16.msra.mxu0 0
        %2396 = vmatprep.subr.bf16.mxu0 0
        %2397 = vmatpush2.bf16.msra.mxu0 0
        %2398 = vmatprep.subr.bf16.mxu0 0
        %2399 = vmatpush2.bf16.msra.mxu0 0
        %2400 = vmatprep.subr.bf16.mxu0 0
        %2401 = vmatpush2.bf16.msra.mxu0 0
        %2402 = vmatprep.subr.bf16.mxu0 0
        %2403 = vmatpush2.bf16.msra.mxu0 0
        %2404 = vmatprep.subr.bf16.mxu0 0
        %2405 = vmatpush2.bf16.msra.mxu0 0
        %2406 = vmatprep.mubr.bf16.mxu0 0
        %2407 = vmatmul.mubr.bf16.gmra.mxu0 %v976
        %v2408 = vpop.f32.mrf.mxu0
        %v2409 = vadd.f32 %v2248, %v2408
        %v2410 = vpop.f32.mrf.mxu0
        %v2411 = vpop.f32.mrf.mxu0
        %v2412 = vadd.f32 %v2251, %v2411
        %v2413 = vpop.f32.mrf.mxu0
        %2414 = vmatprep.mubr.bf16.mxu0 0
        %2415 = vmatmul.mubr.bf16.gmra.mxu0 %v977
        %v2416 = vpop.f32.mrf.mxu0
        %v2417 = vadd.f32 %v2256, %v2416
        %v2418 = vpop.f32.mrf.mxu0
        %v2419 = vpop.f32.mrf.mxu0
        %v2420 = vadd.f32 %v2259, %v2419
        %v2421 = vpop.f32.mrf.mxu0
        %2422 = vmatprep.mubr.bf16.mxu0 0
        %2423 = vmatmul.mubr.bf16.gmra.mxu0 %v978
        %v2424 = vpop.f32.mrf.mxu0
        %v2425 = vadd.f32 %v2264, %v2424
        %v2426 = vpop.f32.mrf.mxu0
        %v2427 = vpop.f32.mrf.mxu0
        %v2428 = vadd.f32 %v2267, %v2427
        %v2429 = vpop.f32.mrf.mxu0
        %2430 = vmatprep.mubr.bf16.mxu0 0
        %2431 = vmatmul.mubr.bf16.gmra.mxu0 %v979
        %v2432 = vpop.f32.mrf.mxu0
        %v2433 = vadd.f32 %v2272, %v2432
        %v2434 = vpop.f32.mrf.mxu0
        %v2435 = vpop.f32.mrf.mxu0
        %v2436 = vadd.f32 %v2275, %v2435
        %v2437 = vpop.f32.mrf.mxu0
        %2438 = vmatprep.mubr.bf16.mxu0 0
        %2439 = vmatmul.mubr.bf16.gmra.mxu0 %v980
        %v2440 = vpop.f32.mrf.mxu0
        %v2441 = vadd.f32 %v2280, %v2440
        %v2442 = vpop.f32.mrf.mxu0
        %v2443 = vpop.f32.mrf.mxu0
        %v2444 = vadd.f32 %v2283, %v2443
        %v2445 = vpop.f32.mrf.mxu0
        %2446 = vmatprep.mubr.bf16.mxu0 0
        %2447 = vmatmul.mubr.bf16.gmra.mxu0 %v981
        %v2448 = vpop.f32.mrf.mxu0
        %v2449 = vadd.f32 %v2288, %v2448
        %v2450 = vpop.f32.mrf.mxu0
        %v2451 = vpop.f32.mrf.mxu0
        %v2452 = vadd.f32 %v2291, %v2451
        %v2453 = vpop.f32.mrf.mxu0
        %2454 = vmatprep.mubr.bf16.mxu0 0
        %2455 = vmatmul.mubr.bf16.gmra.mxu0 %v982
        %v2456 = vpop.f32.mrf.mxu0
        %v2457 = vadd.f32 %v2296, %v2456
        %v2458 = vpop.f32.mrf.mxu0
        %v2459 = vpop.f32.mrf.mxu0
        %v2460 = vadd.f32 %v2299, %v2459
        %v2461 = vpop.f32.mrf.mxu0
        %2462 = vmatprep.mubr.bf16.mxu0 0
        %2463 = vmatmul.mubr.bf16.gmra.mxu0 %v983
        %v2464 = vpop.f32.mrf.mxu0
        %v2465 = vadd.f32 %v2304, %v2464
        %v2466 = vpop.f32.mrf.mxu0
        %v2467 = vpop.f32.mrf.mxu0
        %v2468 = vadd.f32 %v2307, %v2467
        %v2469 = vpop.f32.mrf.mxu0
        %2470 = vmatprep.mubr.bf16.mxu0 0
        %2471 = vmatmul.mubr.bf16.gmra.mxu0 %v984
        %v2472 = vpop.f32.mrf.mxu0
        %v2473 = vadd.f32 %v2312, %v2472
        %v2474 = vpop.f32.mrf.mxu0
        %v2475 = vpop.f32.mrf.mxu0
        %v2476 = vadd.f32 %v2315, %v2475
        %v2477 = vpop.f32.mrf.mxu0
        %2478 = vmatprep.mubr.bf16.mxu0 0
        %2479 = vmatmul.mubr.bf16.gmra.mxu0 %v985
        %v2480 = vpop.f32.mrf.mxu0
        %v2481 = vadd.f32 %v2320, %v2480
        %v2482 = vpop.f32.mrf.mxu0
        %v2483 = vpop.f32.mrf.mxu0
        %v2484 = vadd.f32 %v2323, %v2483
        %v2485 = vpop.f32.mrf.mxu0
        %2486 = vmatprep.mubr.bf16.mxu0 0
        %2487 = vmatmul.mubr.bf16.gmra.mxu0 %v986
        %v2488 = vpop.f32.mrf.mxu0
        %v2489 = vadd.f32 %v2328, %v2488
        %v2490 = vpop.f32.mrf.mxu0
        %v2491 = vpop.f32.mrf.mxu0
        %v2492 = vadd.f32 %v2331, %v2491
        %v2493 = vpop.f32.mrf.mxu0
        %2494 = vmatprep.mubr.bf16.mxu0 0
        %2495 = vmatmul.mubr.bf16.gmra.mxu0 %v987
        %v2496 = vpop.f32.mrf.mxu0
        %v2497 = vadd.f32 %v2336, %v2496
        %v2498 = vpop.f32.mrf.mxu0
        %v2499 = vpop.f32.mrf.mxu0
        %v2500 = vadd.f32 %v2339, %v2499
        %v2501 = vpop.f32.mrf.mxu0
        %2502 = vmatprep.mubr.bf16.mxu0 0
        %2503 = vmatmul.mubr.bf16.gmra.mxu0 %v988
        %v2504 = vpop.f32.mrf.mxu0
        %v2505 = vadd.f32 %v2344, %v2504
        %v2506 = vpop.f32.mrf.mxu0
        %v2507 = vpop.f32.mrf.mxu0
        %v2508 = vadd.f32 %v2347, %v2507
        %v2509 = vpop.f32.mrf.mxu0
        %2510 = vmatprep.mubr.bf16.mxu0 0
        %2511 = vmatmul.mubr.bf16.gmra.mxu0 %v989
        %v2512 = vpop.f32.mrf.mxu0
        %v2513 = vadd.f32 %v2352, %v2512
        %v2514 = vpop.f32.mrf.mxu0
        %v2515 = vpop.f32.mrf.mxu0
        %v2516 = vadd.f32 %v2355, %v2515
        %v2517 = vpop.f32.mrf.mxu0
        %2518 = vmatprep.mubr.bf16.mxu0 0
        %2519 = vmatmul.mubr.bf16.gmra.mxu0 %v990
        %v2520 = vpop.f32.mrf.mxu0
        %v2521 = vadd.f32 %v2360, %v2520
        %v2522 = vpop.f32.mrf.mxu0
        %v2523 = vpop.f32.mrf.mxu0
        %v2524 = vadd.f32 %v2363, %v2523
        %v2525 = vpop.f32.mrf.mxu0
        %2526 = vmatprep.mubr.bf16.mxu0 0
        %2527 = vmatmul.mubr.bf16.gmra.mxu0 0
        %v2528 = vpop.f32.mrf.mxu0
        %v2529 = vadd.f32 %v2368, %v2528
        %v2530 = vpop.f32.mrf.mxu0
        %v2531 = vpop.f32.mrf.mxu0
        %v2532 = vadd.f32 %v2371, %v2531
        %v2533 = vpop.f32.mrf.mxu0
        %2534 = vdwg.mxu0
        %v2535 = vadd.f32 %v1894, %v2409
        %v2536 = vadd.f32 %v1897, %v2412
        %v2537 = vadd.f32 %v1902, %v2417
        %v2538 = vadd.f32 %v1905, %v2420
        %v2539 = vadd.f32 %v1910, %v2425
        %v2540 = vadd.f32 %v1913, %v2428
        %v2541 = vadd.f32 %v1918, %v2433
        %v2542 = vadd.f32 %v1921, %v2436
        %v2543 = vadd.f32 %v1926, %v2441
        %v2544 = vadd.f32 %v1929, %v2444
        %v2545 = vadd.f32 %v1934, %v2449
        %v2546 = vadd.f32 %v1937, %v2452
        %v2547 = vadd.f32 %v1942, %v2457
        %v2548 = vadd.f32 %v1945, %v2460
        %v2549 = vadd.f32 %v1950, %v2465
        %v2550 = vadd.f32 %v1953, %v2468
        %v2551 = vadd.f32 %v1958, %v2473
        %v2552 = vadd.f32 %v1961, %v2476
        %v2553 = vadd.f32 %v1966, %v2481
        %v2554 = vadd.f32 %v1969, %v2484
        %v2555 = vadd.f32 %v1974, %v2489
        %v2556 = vadd.f32 %v1977, %v2492
        %v2557 = vadd.f32 %v1982, %v2497
        %v2558 = vadd.f32 %v1985, %v2500
        %v2559 = vadd.f32 %v1990, %v2505
        %v2560 = vadd.f32 %v1993, %v2508
        %v2561 = vadd.f32 %v1998, %v2513
        %v2562 = vadd.f32 %v2001, %v2516
        %v2563 = vadd.f32 %v2006, %v2521
        %v2564 = vadd.f32 %v2009, %v2524
        %v2565 = vadd.f32 %v2014, %v2529
        %v2566 = vadd.f32 %v2017, %v2532
        %v2567 = vld [vmem:[%s4] sm:$0x1]
        %v2569 = vlaneseq
        %v2570 = vshrl.u32 %v2569, 7
        %v2571 = vsub.s32 0, %v2570
        %v2572 = vrot.slane %v2567, %v2571
        %v2574 = vadd.f32 %v2535, %v2572
        %v2575 = vadd.f32 %v2536, %v2572
        %v2576 = vadd.f32 %v2537, %v2572
        %v2577 = vadd.f32 %v2538, %v2572
        %v2578 = vadd.f32 %v2539, %v2572
        %v2579 = vadd.f32 %v2540, %v2572
        %v2580 = vadd.f32 %v2541, %v2572
        %v2581 = vadd.f32 %v2542, %v2572
        %v2582 = vadd.f32 %v2543, %v2572
        %v2583 = vadd.f32 %v2544, %v2572
        %v2584 = vadd.f32 %v2545, %v2572
        %v2585 = vadd.f32 %v2546, %v2572
        %v2586 = vadd.f32 %v2547, %v2572
        %v2587 = vadd.f32 %v2548, %v2572
        %v2588 = vadd.f32 %v2549, %v2572
        %v2589 = vadd.f32 %v2550, %v2572
        %v2590 = vadd.f32 %v2551, %v2572
        %v2591 = vadd.f32 %v2552, %v2572
        %v2592 = vadd.f32 %v2553, %v2572
        %v2593 = vadd.f32 %v2554, %v2572
        %v2594 = vadd.f32 %v2555, %v2572
        %v2595 = vadd.f32 %v2556, %v2572
        %v2596 = vadd.f32 %v2557, %v2572
        %v2597 = vadd.f32 %v2558, %v2572
        %v2598 = vadd.f32 %v2559, %v2572
        %v2599 = vadd.f32 %v2560, %v2572
        %v2600 = vadd.f32 %v2561, %v2572
        %v2601 = vadd.f32 %v2562, %v2572
        %v2602 = vadd.f32 %v2563, %v2572
        %v2603 = vadd.f32 %v2564, %v2572
        %v2604 = vadd.f32 %v2565, %v2572
        %v2605 = vadd.f32 %v2566, %v2572
        %v2606 = vmax.f32 %v2574, 0.0
        %v2607 = vmax.f32 %v2575, 0.0
        %v2608 = vmax.f32 %v2576, 0.0
        %v2609 = vmax.f32 %v2577, 0.0
        %v2610 = vmax.f32 %v2578, 0.0
        %v2611 = vmax.f32 %v2579, 0.0
        %v2612 = vmax.f32 %v2580, 0.0
        %v2613 = vmax.f32 %v2581, 0.0
        %v2614 = vmax.f32 %v2582, 0.0
        %v2615 = vmax.f32 %v2583, 0.0
        %v2616 = vmax.f32 %v2584, 0.0
        %v2617 = vmax.f32 %v2585, 0.0
        %v2618 = vmax.f32 %v2586, 0.0
        %v2619 = vmax.f32 %v2587, 0.0
        %v2620 = vmax.f32 %v2588, 0.0
        %v2621 = vmax.f32 %v2589, 0.0
        %v2622 = vmax.f32 %v2590, 0.0
        %v2623 = vmax.f32 %v2591, 0.0
        %v2624 = vmax.f32 %v2592, 0.0
        %v2625 = vmax.f32 %v2593, 0.0
        %v2626 = vmax.f32 %v2594, 0.0
        %v2627 = vmax.f32 %v2595, 0.0
        %v2628 = vmax.f32 %v2596, 0.0
        %v2629 = vmax.f32 %v2597, 0.0
        %v2630 = vmax.f32 %v2598, 0.0
        %v2631 = vmax.f32 %v2599, 0.0
        %v2632 = vmax.f32 %v2600, 0.0
        %v2633 = vmax.f32 %v2601, 0.0
        %v2634 = vmax.f32 %v2602, 0.0
        %v2635 = vmax.f32 %v2603, 0.0
        %v2636 = vmax.f32 %v2604, 0.0
        %v2637 = vmax.f32 %v2605, 0.0
        %v2638 = vpack.c.bf16 %v2607, %v2606
        %v2639 = vpack.c.bf16 %v2609, %v2608
        %v2640 = vpack.c.bf16 %v2611, %v2610
        %v2641 = vpack.c.bf16 %v2613, %v2612
        %v2642 = vpack.c.bf16 %v2615, %v2614
        %v2643 = vpack.c.bf16 %v2617, %v2616
        %v2644 = vpack.c.bf16 %v2619, %v2618
        %v2645 = vpack.c.bf16 %v2621, %v2620
        %v2646 = vpack.c.bf16 %v2623, %v2622
        %v2647 = vpack.c.bf16 %v2625, %v2624
        %v2648 = vpack.c.bf16 %v2627, %v2626
        %v2649 = vpack.c.bf16 %v2629, %v2628
        %v2650 = vpack.c.bf16 %v2631, %v2630
        %v2651 = vpack.c.bf16 %v2633, %v2632
        %v2652 = vpack.c.bf16 %v2635, %v2634
        %v2653 = vpack.c.bf16 %v2637, %v2636
        %v2654 = vld [vmem:[#allocation8] sm:$0xf]
        %v2655 = vld [vmem:[#allocation8 + $0x4] sm:$0xf]
        %v2656 = vld [vmem:[#allocation8 + $0x8] sm:$0xf]
        %v2657 = vld [vmem:[#allocation8 + $0xc] sm:$0xf]
        %v2658 = vld [vmem:[#allocation8 + $0x10] sm:$0xf]
        %v2659 = vld [vmem:[#allocation8 + $0x14] sm:$0xf]
        %v2660 = vld [vmem:[#allocation8 + $0x18] sm:$0xf]
        %v2661 = vld [vmem:[#allocation8 + $0x1c] sm:$0xf]
        %v2662 = vld [vmem:[#allocation8 + $0x20] sm:$0xf]
        %v2663 = vld [vmem:[#allocation8 + $0x24] sm:$0xf]
        %v2664 = vld [vmem:[#allocation8 + $0x28] sm:$0xf]
        %v2665 = vld [vmem:[#allocation8 + $0x2c] sm:$0xf]
        %v2666 = vld [vmem:[#allocation8 + $0x30] sm:$0xf]
        %v2667 = vld [vmem:[#allocation8 + $0x34] sm:$0xf]
        %v2668 = vld [vmem:[#allocation8 + $0x38] sm:$0xf]
        %v2669 = vld [vmem:[#allocation8 + $0x3c] sm:$0xf]
        %v2670 = vld [vmem:[%s6] sm:$0x1]
        %v2672 = vlaneseq
        %v2673 = vshrl.u32 %v2672, 7
        %v2674 = vsub.s32 0, %v2673
        %v2675 = vrot.slane %v2670, %v2674
        %v2693 = vunpack.c.l.b16 %v2654
        %v2694 = vunpack.c.l.b16 %v2655
        %v2695 = vunpack.c.l.b16 %v2656
        %v2696 = vunpack.c.l.b16 %v2657
        %v2697 = vunpack.c.l.b16 %v2658
        %v2698 = vunpack.c.l.b16 %v2659
        %v2699 = vunpack.c.l.b16 %v2660
        %v2700 = vunpack.c.l.b16 %v2661
        %v2701 = vunpack.c.l.b16 %v2662
        %v2702 = vunpack.c.l.b16 %v2663
        %v2703 = vunpack.c.l.b16 %v2664
        %v2704 = vunpack.c.l.b16 %v2665
        %v2705 = vunpack.c.l.b16 %v2666
        %v2706 = vunpack.c.l.b16 %v2667
        %v2707 = vunpack.c.l.b16 %v2668
        %v2708 = vunpack.c.l.b16 %v2669
        %v2709 = vpack.c.b16 %v2694, %v2693
        %v2710 = vpack.c.b16 %v2696, %v2695
        %v2711 = vpack.c.b16 %v2698, %v2697
        %v2712 = vpack.c.b16 %v2700, %v2699
        %v2713 = vpack.c.b16 %v2702, %v2701
        %v2714 = vpack.c.b16 %v2704, %v2703
        %v2715 = vpack.c.b16 %v2706, %v2705
        %v2716 = vpack.c.b16 %v2708, %v2707
        %2725 = vmatprep.subr.bf16.mxu0 0
        %2726 = vmatpush1.bf16.msra.mxu0 %v2716
        %2727 = vmatprep.subr.bf16.mxu0 0
        %2728 = vmatpush1.bf16.msra.mxu0 %v2715
        %2729 = vmatprep.subr.bf16.mxu0 0
        %2730 = vmatpush1.bf16.msra.mxu0 %v2714
        %2731 = vmatprep.subr.bf16.mxu0 0
        %2732 = vmatpush1.bf16.msra.mxu0 %v2713
        %2733 = vmatprep.subr.bf16.mxu0 0
        %2734 = vmatpush1.bf16.msra.mxu0 %v2712
        %2735 = vmatprep.subr.bf16.mxu0 0
        %2736 = vmatpush1.bf16.msra.mxu0 %v2711
        %2737 = vmatprep.subr.bf16.mxu0 0
        %2738 = vmatpush1.bf16.msra.mxu0 %v2710
        %2739 = vmatprep.subr.bf16.mxu0 0
        %2740 = vmatpush1.bf16.msra.mxu0 %v2709
        %2741 = vmatprep.subr.bf16.mxu0 0
        %2742 = vmatpush2.bf16.msra.mxu0 0
        %2743 = vmatprep.subr.bf16.mxu0 0
        %2744 = vmatpush2.bf16.msra.mxu0 0
        %2745 = vmatprep.subr.bf16.mxu0 0
        %2746 = vmatpush2.bf16.msra.mxu0 0
        %2747 = vmatprep.subr.bf16.mxu0 0
        %2748 = vmatpush2.bf16.msra.mxu0 0
        %2749 = vmatprep.subr.bf16.mxu0 0
        %2750 = vmatpush2.bf16.msra.mxu0 0
        %2751 = vmatprep.subr.bf16.mxu0 0
        %2752 = vmatpush2.bf16.msra.mxu0 0
        %2753 = vmatprep.subr.bf16.mxu0 0
        %2754 = vmatpush2.bf16.msra.mxu0 0
        %2755 = vmatprep.subr.bf16.mxu0 0
        %2756 = vmatpush2.bf16.msra.mxu0 0
        %2757 = vmatprep.mubr.bf16.mxu0 0
        %2758 = vmatmul.mubr.bf16.gmra.mxu0 %v2638
        %v2759 = vpop.f32.mrf.mxu0
        %v2760 = vadd.f32 %v2675, %v2759
        %v2761 = vpop.f32.mrf.mxu0
        %v2762 = vpop.f32.mrf.mxu0
        %v2763 = vadd.f32 %v2675, %v2762
        %v2764 = vpop.f32.mrf.mxu0
        %2765 = vmatprep.mubr.bf16.mxu0 0
        %2766 = vmatmul.mubr.bf16.gmra.mxu0 %v2639
        %v2767 = vpop.f32.mrf.mxu0
        %v2768 = vadd.f32 %v2675, %v2767
        %v2769 = vpop.f32.mrf.mxu0
        %v2770 = vpop.f32.mrf.mxu0
        %v2771 = vadd.f32 %v2675, %v2770
        %v2772 = vpop.f32.mrf.mxu0
        %2773 = vmatprep.mubr.bf16.mxu0 0
        %2774 = vmatmul.mubr.bf16.gmra.mxu0 %v2640
        %v2775 = vpop.f32.mrf.mxu0
        %v2776 = vadd.f32 %v2675, %v2775
        %v2777 = vpop.f32.mrf.mxu0
        %v2778 = vpop.f32.mrf.mxu0
        %v2779 = vadd.f32 %v2675, %v2778
        %v2780 = vpop.f32.mrf.mxu0
        %2781 = vmatprep.mubr.bf16.mxu0 0
        %2782 = vmatmul.mubr.bf16.gmra.mxu0 %v2641
        %v2783 = vpop.f32.mrf.mxu0
        %v2784 = vadd.f32 %v2675, %v2783
        %v2785 = vpop.f32.mrf.mxu0
        %v2786 = vpop.f32.mrf.mxu0
        %v2787 = vadd.f32 %v2675, %v2786
        %v2788 = vpop.f32.mrf.mxu0
        %2789 = vmatprep.mubr.bf16.mxu0 0
        %2790 = vmatmul.mubr.bf16.gmra.mxu0 %v2642
        %v2791 = vpop.f32.mrf.mxu0
        %v2792 = vadd.f32 %v2675, %v2791
        %v2793 = vpop.f32.mrf.mxu0
        %v2794 = vpop.f32.mrf.mxu0
        %v2795 = vadd.f32 %v2675, %v2794
        %v2796 = vpop.f32.mrf.mxu0
        %2797 = vmatprep.mubr.bf16.mxu0 0
        %2798 = vmatmul.mubr.bf16.gmra.mxu0 %v2643
        %v2799 = vpop.f32.mrf.mxu0
        %v2800 = vadd.f32 %v2675, %v2799
        %v2801 = vpop.f32.mrf.mxu0
        %v2802 = vpop.f32.mrf.mxu0
        %v2803 = vadd.f32 %v2675, %v2802
        %v2804 = vpop.f32.mrf.mxu0
        %2805 = vmatprep.mubr.bf16.mxu0 0
        %2806 = vmatmul.mubr.bf16.gmra.mxu0 %v2644
        %v2807 = vpop.f32.mrf.mxu0
        %v2808 = vadd.f32 %v2675, %v2807
        %v2809 = vpop.f32.mrf.mxu0
        %v2810 = vpop.f32.mrf.mxu0
        %v2811 = vadd.f32 %v2675, %v2810
        %v2812 = vpop.f32.mrf.mxu0
        %2813 = vmatprep.mubr.bf16.mxu0 0
        %2814 = vmatmul.mubr.bf16.gmra.mxu0 %v2645
        %v2815 = vpop.f32.mrf.mxu0
        %v2816 = vadd.f32 %v2675, %v2815
        %v2817 = vpop.f32.mrf.mxu0
        %v2818 = vpop.f32.mrf.mxu0
        %v2819 = vadd.f32 %v2675, %v2818
        %v2820 = vpop.f32.mrf.mxu0
        %2821 = vmatprep.mubr.bf16.mxu0 0
        %2822 = vmatmul.mubr.bf16.gmra.mxu0 %v2646
        %v2823 = vpop.f32.mrf.mxu0
        %v2824 = vadd.f32 %v2675, %v2823
        %v2825 = vpop.f32.mrf.mxu0
        %v2826 = vpop.f32.mrf.mxu0
        %v2827 = vadd.f32 %v2675, %v2826
        %v2828 = vpop.f32.mrf.mxu0
        %2829 = vmatprep.mubr.bf16.mxu0 0
        %2830 = vmatmul.mubr.bf16.gmra.mxu0 %v2647
        %v2831 = vpop.f32.mrf.mxu0
        %v2832 = vadd.f32 %v2675, %v2831
        %v2833 = vpop.f32.mrf.mxu0
        %v2834 = vpop.f32.mrf.mxu0
        %v2835 = vadd.f32 %v2675, %v2834
        %v2836 = vpop.f32.mrf.mxu0
        %2837 = vmatprep.mubr.bf16.mxu0 0
        %2838 = vmatmul.mubr.bf16.gmra.mxu0 %v2648
        %v2839 = vpop.f32.mrf.mxu0
        %v2840 = vadd.f32 %v2675, %v2839
        %v2841 = vpop.f32.mrf.mxu0
        %v2842 = vpop.f32.mrf.mxu0
        %v2843 = vadd.f32 %v2675, %v2842
        %v2844 = vpop.f32.mrf.mxu0
        %2845 = vmatprep.mubr.bf16.mxu0 0
        %2846 = vmatmul.mubr.bf16.gmra.mxu0 %v2649
        %v2847 = vpop.f32.mrf.mxu0
        %v2848 = vadd.f32 %v2675, %v2847
        %v2849 = vpop.f32.mrf.mxu0
        %v2850 = vpop.f32.mrf.mxu0
        %v2851 = vadd.f32 %v2675, %v2850
        %v2852 = vpop.f32.mrf.mxu0
        %2853 = vmatprep.mubr.bf16.mxu0 0
        %2854 = vmatmul.mubr.bf16.gmra.mxu0 %v2650
        %v2855 = vpop.f32.mrf.mxu0
        %v2856 = vadd.f32 %v2675, %v2855
        %v2857 = vpop.f32.mrf.mxu0
        %v2858 = vpop.f32.mrf.mxu0
        %v2859 = vadd.f32 %v2675, %v2858
        %v2860 = vpop.f32.mrf.mxu0
        %2861 = vmatprep.mubr.bf16.mxu0 0
        %2862 = vmatmul.mubr.bf16.gmra.mxu0 %v2651
        %v2863 = vpop.f32.mrf.mxu0
        %v2864 = vadd.f32 %v2675, %v2863
        %v2865 = vpop.f32.mrf.mxu0
        %v2866 = vpop.f32.mrf.mxu0
        %v2867 = vadd.f32 %v2675, %v2866
        %v2868 = vpop.f32.mrf.mxu0
        %2869 = vmatprep.mubr.bf16.mxu0 0
        %2870 = vmatmul.mubr.bf16.gmra.mxu0 %v2652
        %v2871 = vpop.f32.mrf.mxu0
        %v2872 = vadd.f32 %v2675, %v2871
        %v2873 = vpop.f32.mrf.mxu0
        %v2874 = vpop.f32.mrf.mxu0
        %v2875 = vadd.f32 %v2675, %v2874
        %v2876 = vpop.f32.mrf.mxu0
        %2877 = vmatprep.mubr.bf16.mxu0 0
        %2878 = vmatmul.mubr.bf16.gmra.mxu0 %v2653
        %v2879 = vpop.f32.mrf.mxu0
        %v2880 = vadd.f32 %v2675, %v2879
        %v2881 = vpop.f32.mrf.mxu0
        %v2882 = vpop.f32.mrf.mxu0
        %v2883 = vadd.f32 %v2675, %v2882
        %v2884 = vpop.f32.mrf.mxu0
        %2885 = vdwg.mxu0
        %v2886 = vunpack.c.l.bf16 %v342
        %v2887 = vunpack.c.l.bf16 %v343
        %v2888 = vunpack.c.l.bf16 %v344
        %v2889 = vunpack.c.l.bf16 %v345
        %v2890 = vunpack.c.l.bf16 %v346
        %v2891 = vunpack.c.l.bf16 %v347
        %v2892 = vunpack.c.l.bf16 %v348
        %v2893 = vunpack.c.l.bf16 %v349
        %v2894 = vunpack.c.l.bf16 %v350
        %v2895 = vunpack.c.l.bf16 %v351
        %v2896 = vunpack.c.l.bf16 %v352
        %v2897 = vunpack.c.l.bf16 %v353
        %v2898 = vunpack.c.l.bf16 %v354
        %v2899 = vunpack.c.l.bf16 %v355
        %v2900 = vunpack.c.l.bf16 %v356
        %v2901 = vunpack.c.l.bf16 %v357
        %v2902 = vunpack.c.l.bf16 %v358
        %v2903 = vunpack.c.l.bf16 %v359
        %v2904 = vunpack.c.l.bf16 %v360
        %v2905 = vunpack.c.l.bf16 %v361
        %v2906 = vunpack.c.l.bf16 %v362
        %v2907 = vunpack.c.l.bf16 %v363
        %v2908 = vunpack.c.l.bf16 %v364
        %v2909 = vunpack.c.l.bf16 %v365
        %v2910 = vunpack.c.l.bf16 %v366
        %v2911 = vunpack.c.l.bf16 %v367
        %v2912 = vunpack.c.l.bf16 %v368
        %v2913 = vunpack.c.l.bf16 %v369
        %v2914 = vunpack.c.l.bf16 %v370
        %v2915 = vunpack.c.l.bf16 %v371
        %v2916 = vunpack.c.l.bf16 %v372
        %v2917 = vunpack.c.l.bf16 %v373
        %v2918 = vadd.f32 %v2760, %v2886
        %v2919 = vadd.f32 %v2763, %v2887
        %v2920 = vadd.f32 %v2768, %v2888
        %v2921 = vadd.f32 %v2771, %v2889
        %v2922 = vadd.f32 %v2776, %v2890
        %v2923 = vadd.f32 %v2779, %v2891
        %v2924 = vadd.f32 %v2784, %v2892
        %v2925 = vadd.f32 %v2787, %v2893
        %v2926 = vadd.f32 %v2792, %v2894
        %v2927 = vadd.f32 %v2795, %v2895
        %v2928 = vadd.f32 %v2800, %v2896
        %v2929 = vadd.f32 %v2803, %v2897
        %v2930 = vadd.f32 %v2808, %v2898
        %v2931 = vadd.f32 %v2811, %v2899
        %v2932 = vadd.f32 %v2816, %v2900
        %v2933 = vadd.f32 %v2819, %v2901
        %v2934 = vadd.f32 %v2824, %v2902
        %v2935 = vadd.f32 %v2827, %v2903
        %v2936 = vadd.f32 %v2832, %v2904
        %v2937 = vadd.f32 %v2835, %v2905
        %v2938 = vadd.f32 %v2840, %v2906
        %v2939 = vadd.f32 %v2843, %v2907
        %v2940 = vadd.f32 %v2848, %v2908
        %v2941 = vadd.f32 %v2851, %v2909
        %v2942 = vadd.f32 %v2856, %v2910
        %v2943 = vadd.f32 %v2859, %v2911
        %v2944 = vadd.f32 %v2864, %v2912
        %v2945 = vadd.f32 %v2867, %v2913
        %v2946 = vadd.f32 %v2872, %v2914
        %v2947 = vadd.f32 %v2875, %v2915
        %v2948 = vadd.f32 %v2880, %v2916
        %v2949 = vadd.f32 %v2883, %v2917
        %v2950 = vmax.f32 %v2918, 0.0
        %v2951 = vmax.f32 %v2919, 0.0
        %v2952 = vmax.f32 %v2920, 0.0
        %v2953 = vmax.f32 %v2921, 0.0
        %v2954 = vmax.f32 %v2922, 0.0
        %v2955 = vmax.f32 %v2923, 0.0
        %v2956 = vmax.f32 %v2924, 0.0
        %v2957 = vmax.f32 %v2925, 0.0
        %v2958 = vmax.f32 %v2926, 0.0
        %v2959 = vmax.f32 %v2927, 0.0
        %v2960 = vmax.f32 %v2928, 0.0
        %v2961 = vmax.f32 %v2929, 0.0
        %v2962 = vmax.f32 %v2930, 0.0
        %v2963 = vmax.f32 %v2931, 0.0
        %v2964 = vmax.f32 %v2932, 0.0
        %v2965 = vmax.f32 %v2933, 0.0
        %v2966 = vmax.f32 %v2934, 0.0
        %v2967 = vmax.f32 %v2935, 0.0
        %v2968 = vmax.f32 %v2936, 0.0
        %v2969 = vmax.f32 %v2937, 0.0
        %v2970 = vmax.f32 %v2938, 0.0
        %v2971 = vmax.f32 %v2939, 0.0
        %v2972 = vmax.f32 %v2940, 0.0
        %v2973 = vmax.f32 %v2941, 0.0
        %v2974 = vmax.f32 %v2942, 0.0
        %v2975 = vmax.f32 %v2943, 0.0
        %v2976 = vmax.f32 %v2944, 0.0
        %v2977 = vmax.f32 %v2945, 0.0
        %v2978 = vmax.f32 %v2946, 0.0
        %v2979 = vmax.f32 %v2947, 0.0
        %v2980 = vmax.f32 %v2948, 0.0
        %v2981 = vmax.f32 %v2949, 0.0
        %2982 = vst [vmem:[%s340] sm:$0xff] %v2950
        %2983 = vst [vmem:[%s340 + $0x8] sm:$0xff] %v2951
        %2984 = vst [vmem:[%s340 + $0x10] sm:$0xff] %v2952
        %2985 = vst [vmem:[%s340 + $0x18] sm:$0xff] %v2953
        %2986 = vst [vmem:[%s340 + $0x20] sm:$0xff] %v2954
        %2987 = vst [vmem:[%s340 + $0x28] sm:$0xff] %v2955
        %2988 = vst [vmem:[%s340 + $0x30] sm:$0xff] %v2956
        %2989 = vst [vmem:[%s340 + $0x38] sm:$0xff] %v2957
        %2990 = vst [vmem:[%s340 + $0x40] sm:$0xff] %v2958
        %2991 = vst [vmem:[%s340 + $0x48] sm:$0xff] %v2959
        %2992 = vst [vmem:[%s340 + $0x50] sm:$0xff] %v2960
        %2993 = vst [vmem:[%s340 + $0x58] sm:$0xff] %v2961
        %2994 = vst [vmem:[%s340 + $0x60] sm:$0xff] %v2962
        %2995 = vst [vmem:[%s340 + $0x68] sm:$0xff] %v2963
        %2996 = vst [vmem:[%s340 + $0x70] sm:$0xff] %v2964
        %2997 = vst [vmem:[%s340 + $0x78] sm:$0xff] %v2965
        %2998 = vst [vmem:[%s340 + $0x80] sm:$0xff] %v2966
        %2999 = vst [vmem:[%s340 + $0x88] sm:$0xff] %v2967
        %3000 = vst [vmem:[%s340 + $0x90] sm:$0xff] %v2968
        %3001 = vst [vmem:[%s340 + $0x98] sm:$0xff] %v2969
        %3002 = vst [vmem:[%s340 + $0xa0] sm:$0xff] %v2970
        %3003 = vst [vmem:[%s340 + $0xa8] sm:$0xff] %v2971
        %3004 = vst [vmem:[%s340 + $0xb0] sm:$0xff] %v2972
        %3005 = vst [vmem:[%s340 + $0xb8] sm:$0xff] %v2973
        %3006 = vst [vmem:[%s340 + $0xc0] sm:$0xff] %v2974
        %3007 = vst [vmem:[%s340 + $0xc8] sm:$0xff] %v2975
        %3008 = vst [vmem:[%s340 + $0xd0] sm:$0xff] %v2976
        %3009 = vst [vmem:[%s340 + $0xd8] sm:$0xff] %v2977
        %3010 = vst [vmem:[%s340 + $0xe0] sm:$0xff] %v2978
        %3011 = vst [vmem:[%s340 + $0xe8] sm:$0xff] %v2979
        %3012 = vst [vmem:[%s340 + $0xf0] sm:$0xff] %v2980
        %3013 = vst [vmem:[%s340 + $0xf8] sm:$0xff] %v2981
        %s3014 = sand.u32 %s186, 1
        %s3015 = scalar_lea.sflag [#allocation4], %s3014
        %s3016 = sand.u32 %s186, 1
        %s3017 = smul.addr %s3016, 256
        %s3018 = scalar_lea.vmem [#allocation10], %s3017
        // Predicated region
        $region65: #{tpu_custom_call.1} parent=47 // pred_check
          %p3019 = pneg %p196
        $region66: #{tpu_custom_call.1} parent=47 // pred_check_branch
          %3021 = sbr.rel (%p3019) target = $region68
        $region67: #{tpu_custom_call.1} parent=47 // pred_region
          %s3023 = ssub.s32 4096, 4096
          %3024 = vsyncadd %s3015, %s3023
          %s3025 = smul.addr %s26, 32
          %s3026 = smul.addr %s3025, 128
          %s3027 = scalar_lea.hbm %s7, %s3026
          %s3028 = sshll.u32 %s3018, 4
          %s3029 = int_to_ptr.vmem [resolvable:$true] %s3028
          %3034 = dma.vmem_to_hbm [thread:$0]  %s3029, 4096, %s3027, %s3015, 128, 128, 8
        $region68: #{tpu_custom_call.1} parent=47 // pred_fallthru
          _
      $region48: #{tpu_custom_call.1} parent=5 // pred_fallthru
        _
      %p3035 = scmp.le.s32.totalorder 2, %s21
      // Predicated region
      $region69: #{tpu_custom_call.1} parent=5 // pred_check
        %p3036 = pneg %p3035
      $region70: #{tpu_custom_call.1} parent=5 // pred_check_branch
        %3038 = sbr.rel (%p3036) target = $region72
      $region71: #{tpu_custom_call.1} parent=5 // pred_region
        %s3039 = ssub.s32 %s21, 2
        // Predicated region
        $region73: #{tpu_custom_call.1} parent=71 // pred_check
          %p3040 = pneg %p202
        $region74: #{tpu_custom_call.1} parent=71 // pred_check_branch
          %3042 = sbr.rel (%p3040) target = $region76
        $region75: #{tpu_custom_call.1} parent=71 // pred_region
          %s3043 = sand.u32 %s187, 1
          %s3044 = scalar_lea.sflag [#allocation4], %s3043
          %s3045 = sand.u32 %s187, 1
          %s3046 = smul.addr %s3045, 256
          %s3047 = scalar_lea.vmem [#allocation10], %s3046
          %3048 = dma.done %s3044, 4096
        $region76: #{tpu_custom_call.1} parent=71 // pred_fallthru
          _
      $region72: #{tpu_custom_call.1} parent=5 // pred_fallthru
        _
    $region6: #{tpu_custom_call.1} parent=1 // loop_footer
      %s25 = sadd.s32 1, %s21
    $region7: #{tpu_custom_call.1} parent=1 // loop_footer_branch
      %20 = sbr.rel target = $region3
    $region8: #{tpu_custom_call.1} parent=1 // loop_exit
      _
    %3049 = vsyncpa [#allocation3], 1
    %s3050 = scalar_lea.sflag [#allocation3], 1
    %3051 = vsyncpa %s3050, 1
    %3052 = vsyncpa [#allocation6], 1
    %3053 = vsyncpa [#allocation9], 1
    %3054 = vsyncpa [#allocation4], 1
    %s3055 = scalar_lea.sflag [#allocation4], 1
    %3056 = vsyncpa %s3055, 1

</llo_original>
